<compile_context>
chip_gen: v5e
topology: v5e:2x2
jax: 0.10.0
libtpu: 0.0.40
codegen_flags: <defaults>
</compile_context>

<pallas_src>
import jax
import jax.numpy as jnp
from jax.experimental import pallas as pl
from jax.experimental.pallas import tpu as pltpu

# MLP dims from the PyTorch module: 1024 -> 512 -> 256 -> 128 -> 64 -> 16 -> 5
DIMS = (1024, 512, 256, 128, 64, 16, 5)
LANE = 128           # pad any layer width below this up to one full lane group
N_OUT_PADDED = LANE  # final output stored lane-dense; sliced to 5 in wrapper


def _round_up(n, m):
    return (n + m - 1) // m * m


def mlp_kernel(x_ref,
               w1, b1, w2, b2, w3, b3, w4, b4, w5, b5, w6, b6,
               o_ref):
    """Whole 6-layer MLP fused; bf16 weights/activations, f32 accumulation."""

    def layer(h, w_ref, b_ref):
        y = jnp.dot(h, w_ref[...], preferred_element_type=jnp.float32)
        y = jnp.maximum(y + b_ref[...], 0.0)
        return y.astype(jnp.bfloat16)

    # In-kernel f32 -> bf16 cast of the input tile (note: reference is f32
    # end-to-end; f32 accumulation keeps the error within ~2e-2).
    h = x_ref[...].astype(jnp.bfloat16)          # [tile, 1024]
    h = layer(h, w1, b1)
    h = layer(h, w2, b2)
    h = layer(h, w3, b3)
    h = layer(h, w4, b4)
    h = layer(h, w5, b5)
    y = jnp.dot(h, w6[...], preferred_element_type=jnp.float32) + b6[...]
    o_ref[...] = y.astype(o_ref.dtype)           # bf16 [tile, 128] lane-dense


def _choose_batch_tile(B):
    """Large lane/sublane-friendly tile; >=2 grid steps when B >= 32 (v7x TCs)."""
    tile = min(512, _round_up(B, 16))
    if B >= 32 and pl.cdiv(B, tile) < 2:
        tile = _round_up(pl.cdiv(B, 2), 16)
    if tile > B:
        tile = B                 # single block equal to the full batch dim
    return tile


def _build_specs(batch_tile, prepared_params):
    in_specs = [pl.BlockSpec((batch_tile, DIMS[0]), lambda i: (i, 0))]
    for (w, b) in prepared_params:
        # Constant block index -> weights/biases are revisited, not re-DMA'd.
        in_specs.append(pl.BlockSpec(w.shape, lambda i: (0, 0)))
        in_specs.append(pl.BlockSpec(b.shape, lambda i: (0, 0)))
    out_spec = pl.BlockSpec((batch_tile, N_OUT_PADDED), lambda i: (i, 0))
    return in_specs, out_spec


def gate_classification_forward(x, prepared_params, *, batch_tile=None):
    """x: [B, 1024] (f32 or bf16).  prepared_params: output of prepare_params()."""
    B, D = x.shape
    assert D == DIMS[0]
    assert x.dtype in (jnp.float32, jnp.bfloat16)

    if batch_tile is None:
        batch_tile = _choose_batch_tile(B)
    assert batch_tile == B or batch_tile % 16 == 0, \
        "batch_tile must equal B or be a multiple of 16"

    grid = (pl.cdiv(B, batch_tile),)   # ragged B -> partial last block (clipped)
    flat_params = [p for wb in prepared_params for p in wb]
    in_specs, out_spec = _build_specs(batch_tile, prepared_params)

    out = pl.pallas_call(
        mlp_kernel,
        out_shape=jax.ShapeDtypeStruct((B, N_OUT_PADDED), jnp.bfloat16),
        grid_spec=pltpu.PrefetchScalarGridSpec(
            num_scalar_prefetch=0,
            grid=grid,
            in_specs=in_specs,
            out_specs=out_spec,
        ),
        compiler_params=pltpu.CompilerParams(
            dimension_semantics=("parallel",)),
    )(x, *flat_params)

    # Tiny slice + upcast; real columns are exact w.r.t. the padded compute.
    return out[:, :DIMS[-1]].astype(jnp.float32)


def init_params(key):
    """nn.Linear-style init U(-1/sqrt(in), 1/sqrt(in)); weights stored [in, out]."""
    params = []
    for li in range(6):
        fan_in, fan_out = DIMS[li], DIMS[li + 1]
        key, kw, kb = jax.random.split(key, 3)
        bound = 1.0 / jnp.sqrt(fan_in)
        w = jax.random.uniform(kw, (fan_in, fan_out), jnp.float32, -bound, bound)
        b = jax.random.uniform(kb, (1, fan_out), jnp.float32, -bound, bound)
        params.append((w, b))
    return params


def prepare_params(params):
    """Cast weights to bf16 and zero-pad narrow (<128) layer widths to 128.

    Zero columns give relu(0 + 0) = 0 in padded lanes and zero rows of the next
    weight multiply those zeros, so results for the real 5 outputs are exact.
    """
    prepared = []
    prev_out_pad = 0
    for (w, b) in params:
        fan_in, fan_out = w.shape
        out_pad = LANE - fan_out if fan_out < LANE else 0
        wq = jnp.pad(w, ((0, prev_out_pad), (0, out_pad))).astype(jnp.bfloat16)
        bq = jnp.pad(b.reshape(1, -1).astype(jnp.float32),
                     ((0, 0), (0, out_pad)))
        prepared.append((wq, bq))
        prev_out_pad = out_pad
    return prepared


def reference_forward(x, params):
    """Pure-JAX f32 reference matching the PyTorch module."""
    h = x.astype(jnp.float32)
    for i, (w, b) in enumerate(params):
        h = h @ w + b.reshape(1, -1)
        if i < len(params) - 1:
            h = jnp.maximum(h, 0.0)
    return h


if __name__ == "__main__":
    key = jax.random.PRNGKey(0)
    key, kx = jax.random.split(key)

    B = 8  # small serving batch; input feature dim fixed at 1024 by the module
    x = jax.random.normal(kx, (B, DIMS[0]), jnp.float32)

    params = init_params(key)
    prepared = prepare_params(params)

    out = jax.block_until_ready(gate_classification_forward(x, prepared))
    ref = reference_forward(x, params)
    assert out.shape == (B, DIMS[-1])
    # bf16 weights/activations/output with f32 accumulation -> loosened tol.
    assert jnp.allclose(out, ref, atol=2.5e-2, rtol=2.5e-2), "mismatch vs reference"

    # Ragged batch: B=40 -> auto tile 32 -> 2-step parallel grid with a
    # partial last block (no wrapper-side padding copy of x).
    B2 = 40
    x2 = jax.random.normal(jax.random.PRNGKey(1), (B2, DIMS[0]), jnp.float32)
    out2 = jax.block_until_ready(gate_classification_forward(x2, prepared))
    ref2 = reference_forward(x2, params)
    assert out2.shape == (B2, DIMS[-1])
    assert jnp.allclose(out2, ref2, atol=2.5e-2, rtol=2.5e-2), "mismatch (ragged)"

    print("KERNEL_OK")
</pallas_src>

<mosaic_0001>
module attributes {stable_mosaic.version = 11 : i64} {
  func.func @mlp_kernel(%arg0: i32, %arg1: memref<8x1024xf32, #tpu.memory_space<vmem>>, %arg2: memref<1024x512xbf16, #tpu.memory_space<vmem>>, %arg3: memref<1x512xf32, #tpu.memory_space<vmem>>, %arg4: memref<512x256xbf16, #tpu.memory_space<vmem>>, %arg5: memref<1x256xf32, #tpu.memory_space<vmem>>, %arg6: memref<256x128xbf16, #tpu.memory_space<vmem>>, %arg7: memref<1x128xf32, #tpu.memory_space<vmem>>, %arg8: memref<128x128xbf16, #tpu.memory_space<vmem>>, %arg9: memref<1x128xf32, #tpu.memory_space<vmem>>, %arg10: memref<128x128xbf16, #tpu.memory_space<vmem>>, %arg11: memref<1x128xf32, #tpu.memory_space<vmem>>, %arg12: memref<128x128xbf16, #tpu.memory_space<vmem>>, %arg13: memref<1x128xf32, #tpu.memory_space<vmem>>, %arg14: memref<8x128xbf16, #tpu.memory_space<vmem>>) attributes {dimension_semantics = [#tpu.dimension_semantics<parallel>], iteration_bounds = array<i64: 1>, scalar_prefetch = 0 : i64, scratch_operands = 0 : i64, tpu.core_type = #tpu.core_type<tc>, window_params = [{transform_indices = @transform_0, window_bounds = array<i64: 8, 1024>}, {pipeline_mode = #tpu.pipeline_mode<synchronous>, transform_indices = @transform_1, window_bounds = array<i64: 1024, 512>}, {pipeline_mode = #tpu.pipeline_mode<synchronous>, transform_indices = @transform_2, window_bounds = array<i64: 1, 512>}, {pipeline_mode = #tpu.pipeline_mode<synchronous>, transform_indices = @transform_3, window_bounds = array<i64: 512, 256>}, {pipeline_mode = #tpu.pipeline_mode<synchronous>, transform_indices = @transform_4, window_bounds = array<i64: 1, 256>}, {pipeline_mode = #tpu.pipeline_mode<synchronous>, transform_indices = @transform_5, window_bounds = array<i64: 256, 128>}, {pipeline_mode = #tpu.pipeline_mode<synchronous>, transform_indices = @transform_6, window_bounds = array<i64: 1, 128>}, {pipeline_mode = #tpu.pipeline_mode<synchronous>, transform_indices = @transform_7, window_bounds = array<i64: 128, 128>}, {pipeline_mode = #tpu.pipeline_mode<synchronous>, transform_indices = @transform_8, window_bounds = array<i64: 1, 128>}, {pipeline_mode = #tpu.pipeline_mode<synchronous>, transform_indices = @transform_9, window_bounds = array<i64: 128, 128>}, {pipeline_mode = #tpu.pipeline_mode<synchronous>, transform_indices = @transform_10, window_bounds = array<i64: 1, 128>}, {pipeline_mode = #tpu.pipeline_mode<synchronous>, transform_indices = @transform_11, window_bounds = array<i64: 128, 128>}, {pipeline_mode = #tpu.pipeline_mode<synchronous>, transform_indices = @transform_12, window_bounds = array<i64: 1, 128>}, {transform_indices = @transform_13, window_bounds = array<i64: 8, 128>}]} {
    %c0 = arith.constant 0 : index
    %c0_0 = arith.constant 0 : index
    %0 = vector.load %arg1[%c0, %c0_0] : memref<8x1024xf32, #tpu.memory_space<vmem>>, vector<8x1024xf32>
    %1 = arith.truncf %0 : vector<8x1024xf32> to vector<8x1024xbf16>
    %c0_1 = arith.constant 0 : index
    %c0_2 = arith.constant 0 : index
    %2 = vector.load %arg2[%c0_1, %c0_2] : memref<1024x512xbf16, #tpu.memory_space<vmem>>, vector<1024x512xbf16>
    %cst = arith.constant dense<0.000000e+00> : vector<8x512xf32>
    %3 = tpu.matmul %1, %2, %cst {dimension_numbers = #tpu.dot_dimension_numbers<[1], [0], [0], [1], [0, 0, 1, 1], [], []>} : vector<8x1024xbf16>, vector<1024x512xbf16>, vector<8x512xf32> -> vector<8x512xf32>
    %c0_3 = arith.constant 0 : index
    %c0_4 = arith.constant 0 : index
    %4 = vector.load %arg3[%c0_3, %c0_4] : memref<1x512xf32, #tpu.memory_space<vmem>>, vector<1x512xf32>
    %5 = vector.broadcast %4 : vector<1x512xf32> to vector<8x512xf32>
    %6 = arith.addf %3, %5 : vector<8x512xf32>
    %cst_5 = arith.constant 0.000000e+00 : f32
    %7 = vector.broadcast %cst_5 : f32 to vector<8x512xf32>
    %8 = arith.maximumf %6, %7 : vector<8x512xf32>
    %9 = arith.truncf %8 : vector<8x512xf32> to vector<8x512xbf16>
    %c0_6 = arith.constant 0 : index
    %c0_7 = arith.constant 0 : index
    %10 = vector.load %arg4[%c0_6, %c0_7] : memref<512x256xbf16, #tpu.memory_space<vmem>>, vector<512x256xbf16>
    %cst_8 = arith.constant dense<0.000000e+00> : vector<8x256xf32>
    %11 = tpu.matmul %9, %10, %cst_8 {dimension_numbers = #tpu.dot_dimension_numbers<[1], [0], [0], [1], [0, 0, 1, 1], [], []>} : vector<8x512xbf16>, vector<512x256xbf16>, vector<8x256xf32> -> vector<8x256xf32>
    %c0_9 = arith.constant 0 : index
    %c0_10 = arith.constant 0 : index
    %12 = vector.load %arg5[%c0_9, %c0_10] : memref<1x256xf32, #tpu.memory_space<vmem>>, vector<1x256xf32>
    %13 = vector.broadcast %12 : vector<1x256xf32> to vector<8x256xf32>
    %14 = arith.addf %11, %13 : vector<8x256xf32>
    %cst_11 = arith.constant 0.000000e+00 : f32
    %15 = vector.broadcast %cst_11 : f32 to vector<8x256xf32>
    %16 = arith.maximumf %14, %15 : vector<8x256xf32>
    %17 = arith.truncf %16 : vector<8x256xf32> to vector<8x256xbf16>
    %c0_12 = arith.constant 0 : index
    %c0_13 = arith.constant 0 : index
    %18 = vector.load %arg6[%c0_12, %c0_13] : memref<256x128xbf16, #tpu.memory_space<vmem>>, vector<256x128xbf16>
    %cst_14 = arith.constant dense<0.000000e+00> : vector<8x128xf32>
    %19 = tpu.matmul %17, %18, %cst_14 {dimension_numbers = #tpu.dot_dimension_numbers<[1], [0], [0], [1], [0, 0, 1, 1], [], []>} : vector<8x256xbf16>, vector<256x128xbf16>, vector<8x128xf32> -> vector<8x128xf32>
    %c0_15 = arith.constant 0 : index
    %c0_16 = arith.constant 0 : index
    %20 = vector.load %arg7[%c0_15, %c0_16] : memref<1x128xf32, #tpu.memory_space<vmem>>, vector<1x128xf32>
    %21 = vector.broadcast %20 : vector<1x128xf32> to vector<8x128xf32>
    %22 = arith.addf %19, %21 : vector<8x128xf32>
    %cst_17 = arith.constant 0.000000e+00 : f32
    %23 = vector.broadcast %cst_17 : f32 to vector<8x128xf32>
    %24 = arith.maximumf %22, %23 : vector<8x128xf32>
    %25 = arith.truncf %24 : vector<8x128xf32> to vector<8x128xbf16>
    %c0_18 = arith.constant 0 : index
    %c0_19 = arith.constant 0 : index
    %26 = vector.load %arg8[%c0_18, %c0_19] : memref<128x128xbf16, #tpu.memory_space<vmem>>, vector<128x128xbf16>
    %cst_20 = arith.constant dense<0.000000e+00> : vector<8x128xf32>
    %27 = tpu.matmul %25, %26, %cst_20 {dimension_numbers = #tpu.dot_dimension_numbers<[1], [0], [0], [1], [0, 0, 1, 1], [], []>} : vector<8x128xbf16>, vector<128x128xbf16>, vector<8x128xf32> -> vector<8x128xf32>
    %c0_21 = arith.constant 0 : index
    %c0_22 = arith.constant 0 : index
    %28 = vector.load %arg9[%c0_21, %c0_22] : memref<1x128xf32, #tpu.memory_space<vmem>>, vector<1x128xf32>
    %29 = vector.broadcast %28 : vector<1x128xf32> to vector<8x128xf32>
    %30 = arith.addf %27, %29 : vector<8x128xf32>
    %cst_23 = arith.constant 0.000000e+00 : f32
    %31 = vector.broadcast %cst_23 : f32 to vector<8x128xf32>
    %32 = arith.maximumf %30, %31 : vector<8x128xf32>
    %33 = arith.truncf %32 : vector<8x128xf32> to vector<8x128xbf16>
    %c0_24 = arith.constant 0 : index
    %c0_25 = arith.constant 0 : index
    %34 = vector.load %arg10[%c0_24, %c0_25] : memref<128x128xbf16, #tpu.memory_space<vmem>>, vector<128x128xbf16>
    %cst_26 = arith.constant dense<0.000000e+00> : vector<8x128xf32>
    %35 = tpu.matmul %33, %34, %cst_26 {dimension_numbers = #tpu.dot_dimension_numbers<[1], [0], [0], [1], [0, 0, 1, 1], [], []>} : vector<8x128xbf16>, vector<128x128xbf16>, vector<8x128xf32> -> vector<8x128xf32>
    %c0_27 = arith.constant 0 : index
    %c0_28 = arith.constant 0 : index
    %36 = vector.load %arg11[%c0_27, %c0_28] : memref<1x128xf32, #tpu.memory_space<vmem>>, vector<1x128xf32>
    %37 = vector.broadcast %36 : vector<1x128xf32> to vector<8x128xf32>
    %38 = arith.addf %35, %37 : vector<8x128xf32>
    %cst_29 = arith.constant 0.000000e+00 : f32
    %39 = vector.broadcast %cst_29 : f32 to vector<8x128xf32>
    %40 = arith.maximumf %38, %39 : vector<8x128xf32>
    %41 = arith.truncf %40 : vector<8x128xf32> to vector<8x128xbf16>
    %c0_30 = arith.constant 0 : index
    %c0_31 = arith.constant 0 : index
    %42 = vector.load %arg12[%c0_30, %c0_31] : memref<128x128xbf16, #tpu.memory_space<vmem>>, vector<128x128xbf16>
    %cst_32 = arith.constant dense<0.000000e+00> : vector<8x128xf32>
    %43 = tpu.matmul %41, %42, %cst_32 {dimension_numbers = #tpu.dot_dimension_numbers<[1], [0], [0], [1], [0, 0, 1, 1], [], []>} : vector<8x128xbf16>, vector<128x128xbf16>, vector<8x128xf32> -> vector<8x128xf32>
    %c0_33 = arith.constant 0 : index
    %c0_34 = arith.constant 0 : index
    %44 = vector.load %arg13[%c0_33, %c0_34] : memref<1x128xf32, #tpu.memory_space<vmem>>, vector<1x128xf32>
    %45 = vector.broadcast %44 : vector<1x128xf32> to vector<8x128xf32>
    %46 = arith.addf %43, %45 : vector<8x128xf32>
    %47 = arith.truncf %46 : vector<8x128xf32> to vector<8x128xbf16>
    %c0_35 = arith.constant 0 : index
    %c0_36 = arith.constant 0 : index
    %48 = vector.load %arg14[%c0_35, %c0_36] : memref<8x128xbf16, #tpu.memory_space<vmem>>, vector<8x128xbf16>
    tpu.vector_store %arg14[%c0_35, %c0_36], %47 {strides = array<i32>} : memref<8x128xbf16, #tpu.memory_space<vmem>>, vector<8x128xbf16>,
    return
  }
  func.func @transform_0(%arg0: i32) -> (i32, i32) {
    %c0_i32 = arith.constant 0 : i32
    %c0_i32_0 = arith.constant 0 : i32
    return %arg0, %c0_i32 : i32, i32
  }
  func.func @transform_1(%arg0: i32) -> (i32, i32) {
    %c0_i32 = arith.constant 0 : i32
    %c0_i32_0 = arith.constant 0 : i32
    %c0_i32_1 = arith.constant 0 : i32
    return %c0_i32, %c0_i32_0 : i32, i32
  }
  func.func @transform_2(%arg0: i32) -> (i32, i32) {
    %c0_i32 = arith.constant 0 : i32
    %c0_i32_0 = arith.constant 0 : i32
    %c0_i32_1 = arith.constant 0 : i32
    return %c0_i32, %c0_i32_0 : i32, i32
  }
  func.func @transform_3(%arg0: i32) -> (i32, i32) {
    %c0_i32 = arith.constant 0 : i32
    %c0_i32_0 = arith.constant 0 : i32
    %c0_i32_1 = arith.constant 0 : i32
    return %c0_i32, %c0_i32_0 : i32, i32
  }
  func.func @transform_4(%arg0: i32) -> (i32, i32) {
    %c0_i32 = arith.constant 0 : i32
    %c0_i32_0 = arith.constant 0 : i32
    %c0_i32_1 = arith.constant 0 : i32
    return %c0_i32, %c0_i32_0 : i32, i32
  }
  func.func @transform_5(%arg0: i32) -> (i32, i32) {
    %c0_i32 = arith.constant 0 : i32
    %c0_i32_0 = arith.constant 0 : i32
    %c0_i32_1 = arith.constant 0 : i32
    return %c0_i32, %c0_i32_0 : i32, i32
  }
  func.func @transform_6(%arg0: i32) -> (i32, i32) {
    %c0_i32 = arith.constant 0 : i32
    %c0_i32_0 = arith.constant 0 : i32
    %c0_i32_1 = arith.constant 0 : i32
    return %c0_i32, %c0_i32_0 : i32, i32
  }
  func.func @transform_7(%arg0: i32) -> (i32, i32) {
    %c0_i32 = arith.constant 0 : i32
    %c0_i32_0 = arith.constant 0 : i32
    %c0_i32_1 = arith.constant 0 : i32
    return %c0_i32, %c0_i32_0 : i32, i32
  }
  func.func @transform_8(%arg0: i32) -> (i32, i32) {
    %c0_i32 = arith.constant 0 : i32
    %c0_i32_0 = arith.constant 0 : i32
    %c0_i32_1 = arith.constant 0 : i32
    return %c0_i32, %c0_i32_0 : i32, i32
  }
  func.func @transform_9(%arg0: i32) -> (i32, i32) {
    %c0_i32 = arith.constant 0 : i32
    %c0_i32_0 = arith.constant 0 : i32
    %c0_i32_1 = arith.constant 0 : i32
    return %c0_i32, %c0_i32_0 : i32, i32
  }
  func.func @transform_10(%arg0: i32) -> (i32, i32) {
    %c0_i32 = arith.constant 0 : i32
    %c0_i32_0 = arith.constant 0 : i32
    %c0_i32_1 = arith.constant 0 : i32
    return %c0_i32, %c0_i32_0 : i32, i32
  }
  func.func @transform_11(%arg0: i32) -> (i32, i32) {
    %c0_i32 = arith.constant 0 : i32
    %c0_i32_0 = arith.constant 0 : i32
    %c0_i32_1 = arith.constant 0 : i32
    return %c0_i32, %c0_i32_0 : i32, i32
  }
  func.func @transform_12(%arg0: i32) -> (i32, i32) {
    %c0_i32 = arith.constant 0 : i32
    %c0_i32_0 = arith.constant 0 : i32
    %c0_i32_1 = arith.constant 0 : i32
    return %c0_i32, %c0_i32_0 : i32, i32
  }
  func.func @transform_13(%arg0: i32) -> (i32, i32) {
    %c0_i32 = arith.constant 0 : i32
    %c0_i32_0 = arith.constant 0 : i32
    return %arg0, %c0_i32 : i32, i32
  }
}

</mosaic_0001>

<llo_original>
// kernel: tpu_custom_call.1
$region0: #{tpu_custom_call.1}
  #allocation0 [shape = 'u32[]', space=smem, size = 0x4, offset = 0x4, fixed_abs, tag = 'smem constant byte address 0x4 - core index']
  #allocation1 [shape = 'u32[72,128]{1,0:T(1,128)}', space=vmem, size = 0x9000, scoped, tag = 'internal scratch']
  %s0 = inlined_call_operand.hbm [shape: f32[8,1024], index: 0, kind: input, shape index: {}]
  %s1 = inlined_call_operand.hbm [shape: bf16[1024,512], index: 1, kind: input, shape index: {}]
  %s2 = inlined_call_operand.hbm [shape: f32[1,512], index: 2, kind: input, shape index: {}]
  %s3 = inlined_call_operand.hbm [shape: bf16[512,256], index: 3, kind: input, shape index: {}]
  %s4 = inlined_call_operand.vmem [shape: f32[1,256], index: 4, kind: input, shape index: {}]
  %s5 = inlined_call_operand.hbm [shape: bf16[256,128], index: 5, kind: input, shape index: {}]
  %s6 = inlined_call_operand.vmem [shape: f32[1,128], index: 6, kind: input, shape index: {}]
  %s7 = inlined_call_operand.hbm [shape: bf16[128,128], index: 7, kind: input, shape index: {}]
  %s8 = inlined_call_operand.vmem [shape: f32[1,128], index: 8, kind: input, shape index: {}]
  %s9 = inlined_call_operand.hbm [shape: bf16[128,128], index: 9, kind: input, shape index: {}]
  %s10 = inlined_call_operand.vmem [shape: f32[1,128], index: 10, kind: input, shape index: {}]
  %s11 = inlined_call_operand.hbm [shape: bf16[128,128], index: 11, kind: input, shape index: {}]
  %s12 = inlined_call_operand.vmem [shape: f32[1,128], index: 12, kind: input, shape index: {}]
  %s13 = inlined_call_operand.hbm [shape: bf16[8,128], index: 13, kind: output, shape index: {}]
  %s14 = sld [smem:[#allocation0]]
  $region94: #{tpu_custom_call.1} parent=0
    _
  %s16 = ssub.s32 1, %s14
  %s17 = scalar_select 0, %s16, %s14
  $region1: #{tpu_custom_call.1} parent=0
    #allocation2 [shape = 'u8[32768]{0}', space=vmem, size = 0x8000, scoped, tag = 'input window, operand 0, single buffered']
    #allocation3 [shape = 's32[1]{0}', space=sflag, size = 0x4, scoped, tag = 'scoped memory for tpu_custom_call.1']
    #allocation4 [shape = 's32[1]{0}', space=sflag, size = 0x4, scoped, tag = 'scoped memory for tpu_custom_call.1']
    #allocation5 [shape = 'u8[1048576]{0}', space=vmem, size = 0x100000, scoped, tag = 'input window, operand 1, single buffered']
    #allocation6 [shape = 's32[1]{0}', space=sflag, size = 0x4, scoped, tag = 'scoped memory for tpu_custom_call.1']
    #allocation7 [shape = 'u8[2048]{0}', space=vmem, size = 0x800, scoped, tag = 'input window, operand 2, single buffered']
    #allocation8 [shape = 'u8[262144]{0}', space=vmem, size = 0x40000, scoped, tag = 'input window, operand 3, single buffered']
    #allocation9 [shape = 's32[1]{0}', space=sflag, size = 0x4, scoped, tag = 'scoped memory for tpu_custom_call.1']
    #allocation10 [shape = 'u8[65536]{0}', space=vmem, size = 0x10000, scoped, tag = 'input window, operand 5, single buffered']
    #allocation11 [shape = 'u8[32768]{0}', space=vmem, size = 0x8000, scoped, tag = 'input window, operand 7, single buffered']
    #allocation12 [shape = 's32[1]{0}', space=sflag, size = 0x4, scoped, tag = 'scoped memory for tpu_custom_call.1']
    #allocation13 [shape = 'u8[32768]{0}', space=vmem, size = 0x8000, scoped, tag = 'input window, operand 9, single buffered']
    #allocation14 [shape = 'u8[32768]{0}', space=vmem, size = 0x8000, scoped, tag = 'input window, operand 11, single buffered']
    #allocation15 [shape = 's32[1]{0}', space=sflag, size = 0x4, scoped, tag = 'scoped memory for tpu_custom_call.1']
    #allocation16 [shape = 'u8[2048]{0}', space=vmem, size = 0x800, scoped, tag = 'output window, operand 0, single buffered']
    %18 = vsyncpa [#allocation3], 0
    %19 = vsyncpa [#allocation6], 0
    %20 = vsyncpa [#allocation9], 0
    %21 = vsyncpa [#allocation12], 0
    %22 = vsyncpa [#allocation15], 0
    %23 = vsyncpa [#allocation4], 0
    // Predicated region
    $region2: #{tpu_custom_call.1} parent=1 // pred_check
      _
    $region3: #{tpu_custom_call.1} parent=1 // pred_check_branch
      %25 = sbr.rel (0) target = $region5
    $region4: #{tpu_custom_call.1} parent=1 // pred_region
      %27 = vsyncadd [#allocation3], 0
      %s29 = sshll.u32 %s0, 4
      %s30 = int_to_ptr.hbm [resolvable:$true] %s29
      %s31 = sshll.u32 [#allocation2], 4
      %s32 = int_to_ptr.vmem [resolvable:$true] %s31
      %34 = dma.hbm_to_vmem [thread:$0]  %s30, 1024, %s32, [#allocation3]
    $region5: #{tpu_custom_call.1} parent=1 // pred_fallthru
      _
    // Predicated region
    $region6: #{tpu_custom_call.1} parent=1 // pred_check
      _
    $region7: #{tpu_custom_call.1} parent=1 // pred_check_branch
      %36 = sbr.rel (0) target = $region9
    $region8: #{tpu_custom_call.1} parent=1 // pred_region
      %38 = vsyncadd [#allocation6], 0
      %s39 = sshll.u32 %s1, 4
      %s40 = int_to_ptr.hbm [resolvable:$true] %s39
      %s41 = sshll.u32 [#allocation5], 4
      %s42 = int_to_ptr.vmem [resolvable:$true] %s41
      %47 = dma.hbm_to_vmem [thread:$0]  %s40, 32768, %s42, [#allocation6], 256, 256, 16
    $region9: #{tpu_custom_call.1} parent=1 // pred_fallthru
      _
    // Predicated region
    $region10: #{tpu_custom_call.1} parent=1 // pred_check
      _
    $region11: #{tpu_custom_call.1} parent=1 // pred_check_branch
      %49 = sbr.rel (0) target = $region13
    $region12: #{tpu_custom_call.1} parent=1 // pred_region
      %51 = vsyncadd [#allocation6], 0
      %s53 = sshll.u32 %s2, 4
      %s54 = int_to_ptr.hbm [resolvable:$true] %s53
      %s55 = sshll.u32 [#allocation7], 4
      %s56 = int_to_ptr.vmem [resolvable:$true] %s55
      %58 = dma.hbm_to_vmem [thread:$0]  %s54, 64, %s56, [#allocation6]
    $region13: #{tpu_custom_call.1} parent=1 // pred_fallthru
      _
    // Predicated region
    $region14: #{tpu_custom_call.1} parent=1 // pred_check
      _
    $region15: #{tpu_custom_call.1} parent=1 // pred_check_branch
      %60 = sbr.rel (0) target = $region17
    $region16: #{tpu_custom_call.1} parent=1 // pred_region
      %62 = vsyncadd [#allocation9], 0
      %s63 = sshll.u32 %s3, 4
      %s64 = int_to_ptr.hbm [resolvable:$true] %s63
      %s65 = sshll.u32 [#allocation8], 4
      %s66 = int_to_ptr.vmem [resolvable:$true] %s65
      %71 = dma.hbm_to_vmem [thread:$0]  %s64, 8192, %s66, [#allocation9], 128, 128, 8
    $region17: #{tpu_custom_call.1} parent=1 // pred_fallthru
      _
    // Predicated region
    $region18: #{tpu_custom_call.1} parent=1 // pred_check
      _
    $region19: #{tpu_custom_call.1} parent=1 // pred_check_branch
      %73 = sbr.rel (0) target = $region21
    $region20: #{tpu_custom_call.1} parent=1 // pred_region
      _
    $region21: #{tpu_custom_call.1} parent=1 // pred_fallthru
      _
    // Predicated region
    $region22: #{tpu_custom_call.1} parent=1 // pred_check
      _
    $region23: #{tpu_custom_call.1} parent=1 // pred_check_branch
      %75 = sbr.rel (0) target = $region25
    $region24: #{tpu_custom_call.1} parent=1 // pred_region
      %77 = vsyncadd [#allocation9], 0
      %s78 = sshll.u32 %s5, 4
      %s79 = int_to_ptr.hbm [resolvable:$true] %s78
      %s80 = sshll.u32 [#allocation10], 4
      %s81 = int_to_ptr.vmem [resolvable:$true] %s80
      %86 = dma.hbm_to_vmem [thread:$0]  %s79, 2048, %s81, [#allocation9], 64, 64, 4
    $region25: #{tpu_custom_call.1} parent=1 // pred_fallthru
      _
    // Predicated region
    $region26: #{tpu_custom_call.1} parent=1 // pred_check
      _
    $region27: #{tpu_custom_call.1} parent=1 // pred_check_branch
      %88 = sbr.rel (0) target = $region29
    $region28: #{tpu_custom_call.1} parent=1 // pred_region
      _
    $region29: #{tpu_custom_call.1} parent=1 // pred_fallthru
      _
    // Predicated region
    $region30: #{tpu_custom_call.1} parent=1 // pred_check
      _
    $region31: #{tpu_custom_call.1} parent=1 // pred_check_branch
      %90 = sbr.rel (0) target = $region33
    $region32: #{tpu_custom_call.1} parent=1 // pred_region
      %92 = vsyncadd [#allocation12], 0
      %s93 = sshll.u32 %s7, 4
      %s94 = int_to_ptr.hbm [resolvable:$true] %s93
      %s95 = sshll.u32 [#allocation11], 4
      %s96 = int_to_ptr.vmem [resolvable:$true] %s95
      %101 = dma.hbm_to_vmem [thread:$0]  %s94, 1024, %s96, [#allocation12], 64, 64, 4
    $region33: #{tpu_custom_call.1} parent=1 // pred_fallthru
      _
    // Predicated region
    $region34: #{tpu_custom_call.1} parent=1 // pred_check
      _
    $region35: #{tpu_custom_call.1} parent=1 // pred_check_branch
      %103 = sbr.rel (0) target = $region37
    $region36: #{tpu_custom_call.1} parent=1 // pred_region
      _
    $region37: #{tpu_custom_call.1} parent=1 // pred_fallthru
      _
    // Predicated region
    $region38: #{tpu_custom_call.1} parent=1 // pred_check
      _
    $region39: #{tpu_custom_call.1} parent=1 // pred_check_branch
      %105 = sbr.rel (0) target = $region41
    $region40: #{tpu_custom_call.1} parent=1 // pred_region
      %107 = vsyncadd [#allocation12], 0
      %s108 = sshll.u32 %s9, 4
      %s109 = int_to_ptr.hbm [resolvable:$true] %s108
      %s110 = sshll.u32 [#allocation13], 4
      %s111 = int_to_ptr.vmem [resolvable:$true] %s110
      %116 = dma.hbm_to_vmem [thread:$0]  %s109, 1024, %s111, [#allocation12], 64, 64, 4
    $region41: #{tpu_custom_call.1} parent=1 // pred_fallthru
      _
    // Predicated region
    $region42: #{tpu_custom_call.1} parent=1 // pred_check
      _
    $region43: #{tpu_custom_call.1} parent=1 // pred_check_branch
      %118 = sbr.rel (0) target = $region45
    $region44: #{tpu_custom_call.1} parent=1 // pred_region
      _
    $region45: #{tpu_custom_call.1} parent=1 // pred_fallthru
      _
    // Predicated region
    $region46: #{tpu_custom_call.1} parent=1 // pred_check
      _
    $region47: #{tpu_custom_call.1} parent=1 // pred_check_branch
      %120 = sbr.rel (0) target = $region49
    $region48: #{tpu_custom_call.1} parent=1 // pred_region
      %122 = vsyncadd [#allocation15], 0
      %s123 = sshll.u32 %s11, 4
      %s124 = int_to_ptr.hbm [resolvable:$true] %s123
      %s125 = sshll.u32 [#allocation14], 4
      %s126 = int_to_ptr.vmem [resolvable:$true] %s125
      %131 = dma.hbm_to_vmem [thread:$0]  %s124, 1024, %s126, [#allocation15], 64, 64, 4
    $region49: #{tpu_custom_call.1} parent=1 // pred_fallthru
      _
    // Predicated region
    $region50: #{tpu_custom_call.1} parent=1 // pred_check
      _
    $region51: #{tpu_custom_call.1} parent=1 // pred_check_branch
      %133 = sbr.rel (0) target = $region53
    $region52: #{tpu_custom_call.1} parent=1 // pred_region
      _
    $region53: #{tpu_custom_call.1} parent=1 // pred_fallthru
      _
    // Predicated region
    $region54: #{tpu_custom_call.1} parent=1 // pred_check
      _
    $region55: #{tpu_custom_call.1} parent=1 // pred_check_branch
      %135 = sbr.rel (0) target = $region57
    $region56: #{tpu_custom_call.1} parent=1 // pred_region
      %137 = dma.done [#allocation3], 1024
    $region57: #{tpu_custom_call.1} parent=1 // pred_fallthru
      _
    // Predicated region
    $region58: #{tpu_custom_call.1} parent=1 // pred_check
      _
    $region59: #{tpu_custom_call.1} parent=1 // pred_check_branch
      %139 = sbr.rel (0) target = $region61
    $region60: #{tpu_custom_call.1} parent=1 // pred_region
      %141 = dma.done [#allocation6], 32768
    $region61: #{tpu_custom_call.1} parent=1 // pred_fallthru
      _
    // Predicated region
    $region62: #{tpu_custom_call.1} parent=1 // pred_check
      _
    $region63: #{tpu_custom_call.1} parent=1 // pred_check_branch
      %143 = sbr.rel (0) target = $region65
    $region64: #{tpu_custom_call.1} parent=1 // pred_region
      %145 = dma.done [#allocation6], 64
    $region65: #{tpu_custom_call.1} parent=1 // pred_fallthru
      _
    // Predicated region
    $region66: #{tpu_custom_call.1} parent=1 // pred_check
      _
    $region67: #{tpu_custom_call.1} parent=1 // pred_check_branch
      %147 = sbr.rel (0) target = $region69
    $region68: #{tpu_custom_call.1} parent=1 // pred_region
      %149 = dma.done [#allocation9], 8192
    $region69: #{tpu_custom_call.1} parent=1 // pred_fallthru
      _
    // Predicated region
    $region70: #{tpu_custom_call.1} parent=1 // pred_check
      _
    $region71: #{tpu_custom_call.1} parent=1 // pred_check_branch
      %151 = sbr.rel (0) target = $region73
    $region72: #{tpu_custom_call.1} parent=1 // pred_region
      %153 = dma.done [#allocation9], 2048
    $region73: #{tpu_custom_call.1} parent=1 // pred_fallthru
      _
    // Predicated region
    $region74: #{tpu_custom_call.1} parent=1 // pred_check
      _
    $region75: #{tpu_custom_call.1} parent=1 // pred_check_branch
      %155 = sbr.rel (0) target = $region77
    $region76: #{tpu_custom_call.1} parent=1 // pred_region
      %157 = dma.done [#allocation12], 1024
    $region77: #{tpu_custom_call.1} parent=1 // pred_fallthru
      _
    // Predicated region
    $region78: #{tpu_custom_call.1} parent=1 // pred_check
      _
    $region79: #{tpu_custom_call.1} parent=1 // pred_check_branch
      %159 = sbr.rel (0) target = $region81
    $region80: #{tpu_custom_call.1} parent=1 // pred_region
      %161 = dma.done [#allocation12], 1024
    $region81: #{tpu_custom_call.1} parent=1 // pred_fallthru
      _
    // Predicated region
    $region82: #{tpu_custom_call.1} parent=1 // pred_check
      _
    $region83: #{tpu_custom_call.1} parent=1 // pred_check_branch
      %163 = sbr.rel (0) target = $region85
    $region84: #{tpu_custom_call.1} parent=1 // pred_region
      %165 = dma.done [#allocation15], 1024
    $region85: #{tpu_custom_call.1} parent=1 // pred_fallthru
      _
    %v166 = vld [vmem:[#allocation2] sm:$0xff]
    %v167 = vld [vmem:[#allocation2 + $0x8] sm:$0xff]
    %v168 = vld [vmem:[#allocation2 + $0x10] sm:$0xff]
    %v169 = vld [vmem:[#allocation2 + $0x18] sm:$0xff]
    %v170 = vld [vmem:[#allocation2 + $0x20] sm:$0xff]
    %v171 = vld [vmem:[#allocation2 + $0x28] sm:$0xff]
    %v172 = vld [vmem:[#allocation2 + $0x30] sm:$0xff]
    %v173 = vld [vmem:[#allocation2 + $0x38] sm:$0xff]
    %v174 = vpack.c.bf16 %v166, %v166
    %v175 = vpack.c.bf16 %v167, %v167
    %v176 = vpack.c.bf16 %v168, %v168
    %v177 = vpack.c.bf16 %v169, %v169
    %v178 = vpack.c.bf16 %v170, %v170
    %v179 = vpack.c.bf16 %v171, %v171
    %v180 = vpack.c.bf16 %v172, %v172
    %v181 = vpack.c.bf16 %v173, %v173
    %v182 = vld [vmem:[#allocation5] sm:$0xff]
    %v183 = vld [vmem:[#allocation5 + $0x8] sm:$0xff]
    %v184 = vld [vmem:[#allocation5 + $0x10] sm:$0xff]
    %v185 = vld [vmem:[#allocation5 + $0x18] sm:$0xff]
    %v186 = vld [vmem:[#allocation5 + $0x20] sm:$0xff]
    %v187 = vld [vmem:[#allocation5 + $0x28] sm:$0xff]
    %v188 = vld [vmem:[#allocation5 + $0x30] sm:$0xff]
    %v189 = vld [vmem:[#allocation5 + $0x38] sm:$0xff]
    %v190 = vld [vmem:[#allocation5 + $0x40] sm:$0xff]
    %v191 = vld [vmem:[#allocation5 + $0x48] sm:$0xff]
    %v192 = vld [vmem:[#allocation5 + $0x50] sm:$0xff]
    %v193 = vld [vmem:[#allocation5 + $0x58] sm:$0xff]
    %v194 = vld [vmem:[#allocation5 + $0x60] sm:$0xff]
    %v195 = vld [vmem:[#allocation5 + $0x68] sm:$0xff]
    %v196 = vld [vmem:[#allocation5 + $0x70] sm:$0xff]
    %v197 = vld [vmem:[#allocation5 + $0x78] sm:$0xff]
    %v198 = vld [vmem:[#allocation5 + $0x80] sm:$0xff]
    %v199 = vld [vmem:[#allocation5 + $0x88] sm:$0xff]
    %v200 = vld [vmem:[#allocation5 + $0x90] sm:$0xff]
    %v201 = vld [vmem:[#allocation5 + $0x98] sm:$0xff]
    %v202 = vld [vmem:[#allocation5 + $0xa0] sm:$0xff]
    %v203 = vld [vmem:[#allocation5 + $0xa8] sm:$0xff]
    %v204 = vld [vmem:[#allocation5 + $0xb0] sm:$0xff]
    %v205 = vld [vmem:[#allocation5 + $0xb8] sm:$0xff]
    %v206 = vld [vmem:[#allocation5 + $0xc0] sm:$0xff]
    %v207 = vld [vmem:[#allocation5 + $0xc8] sm:$0xff]
    %v208 = vld [vmem:[#allocation5 + $0xd0] sm:$0xff]
    %v209 = vld [vmem:[#allocation5 + $0xd8] sm:$0xff]
    %v210 = vld [vmem:[#allocation5 + $0xe0] sm:$0xff]
    %v211 = vld [vmem:[#allocation5 + $0xe8] sm:$0xff]
    %v212 = vld [vmem:[#allocation5 + $0xf0] sm:$0xff]
    %v213 = vld [vmem:[#allocation5 + $0xf8] sm:$0xff]
    %v214 = vld [vmem:[#allocation5 + $0x100] sm:$0xff]
    %v215 = vld [vmem:[#allocation5 + $0x108] sm:$0xff]
    %v216 = vld [vmem:[#allocation5 + $0x110] sm:$0xff]
    %v217 = vld [vmem:[#allocation5 + $0x118] sm:$0xff]
    %v218 = vld [vmem:[#allocation5 + $0x120] sm:$0xff]
    %v219 = vld [vmem:[#allocation5 + $0x128] sm:$0xff]
    %v220 = vld [vmem:[#allocation5 + $0x130] sm:$0xff]
    %v221 = vld [vmem:[#allocation5 + $0x138] sm:$0xff]
    %v222 = vld [vmem:[#allocation5 + $0x140] sm:$0xff]
    %v223 = vld [vmem:[#allocation5 + $0x148] sm:$0xff]
    %v224 = vld [vmem:[#allocation5 + $0x150] sm:$0xff]
    %v225 = vld [vmem:[#allocation5 + $0x158] sm:$0xff]
    %v226 = vld [vmem:[#allocation5 + $0x160] sm:$0xff]
    %v227 = vld [vmem:[#allocation5 + $0x168] sm:$0xff]
    %v228 = vld [vmem:[#allocation5 + $0x170] sm:$0xff]
    %v229 = vld [vmem:[#allocation5 + $0x178] sm:$0xff]
    %v230 = vld [vmem:[#allocation5 + $0x180] sm:$0xff]
    %v231 = vld [vmem:[#allocation5 + $0x188] sm:$0xff]
    %v232 = vld [vmem:[#allocation5 + $0x190] sm:$0xff]
    %v233 = vld [vmem:[#allocation5 + $0x198] sm:$0xff]
    %v234 = vld [vmem:[#allocation5 + $0x1a0] sm:$0xff]
    %v235 = vld [vmem:[#allocation5 + $0x1a8] sm:$0xff]
    %v236 = vld [vmem:[#allocation5 + $0x1b0] sm:$0xff]
    %v237 = vld [vmem:[#allocation5 + $0x1b8] sm:$0xff]
    %v238 = vld [vmem:[#allocation5 + $0x1c0] sm:$0xff]
    %v239 = vld [vmem:[#allocation5 + $0x1c8] sm:$0xff]
    %v240 = vld [vmem:[#allocation5 + $0x1d0] sm:$0xff]
    %v241 = vld [vmem:[#allocation5 + $0x1d8] sm:$0xff]
    %v242 = vld [vmem:[#allocation5 + $0x1e0] sm:$0xff]
    %v243 = vld [vmem:[#allocation5 + $0x1e8] sm:$0xff]
    %v244 = vld [vmem:[#allocation5 + $0x1f0] sm:$0xff]
    %v245 = vld [vmem:[#allocation5 + $0x1f8] sm:$0xff]
    %v246 = vld [vmem:[#allocation5 + $0x200] sm:$0xff]
    %v247 = vld [vmem:[#allocation5 + $0x208] sm:$0xff]
    %v248 = vld [vmem:[#allocation5 + $0x210] sm:$0xff]
    %v249 = vld [vmem:[#allocation5 + $0x218] sm:$0xff]
    %v250 = vld [vmem:[#allocation5 + $0x220] sm:$0xff]
    %v251 = vld [vmem:[#allocation5 + $0x228] sm:$0xff]
    %v252 = vld [vmem:[#allocation5 + $0x230] sm:$0xff]
    %v253 = vld [vmem:[#allocation5 + $0x238] sm:$0xff]
    %v254 = vld [vmem:[#allocation5 + $0x240] sm:$0xff]
    %v255 = vld [vmem:[#allocation5 + $0x248] sm:$0xff]
    %v256 = vld [vmem:[#allocation5 + $0x250] sm:$0xff]
    %v257 = vld [vmem:[#allocation5 + $0x258] sm:$0xff]
    %v258 = vld [vmem:[#allocation5 + $0x260] sm:$0xff]
    %v259 = vld [vmem:[#allocation5 + $0x268] sm:$0xff]
    %v260 = vld [vmem:[#allocation5 + $0x270] sm:$0xff]
    %v261 = vld [vmem:[#allocation5 + $0x278] sm:$0xff]
    %v262 = vld [vmem:[#allocation5 + $0x280] sm:$0xff]
    %v263 = vld [vmem:[#allocation5 + $0x288] sm:$0xff]
    %v264 = vld [vmem:[#allocation5 + $0x290] sm:$0xff]
    %v265 = vld [vmem:[#allocation5 + $0x298] sm:$0xff]
    %v266 = vld [vmem:[#allocation5 + $0x2a0] sm:$0xff]
    %v267 = vld [vmem:[#allocation5 + $0x2a8] sm:$0xff]
    %v268 = vld [vmem:[#allocation5 + $0x2b0] sm:$0xff]
    %v269 = vld [vmem:[#allocation5 + $0x2b8] sm:$0xff]
    %v270 = vld [vmem:[#allocation5 + $0x2c0] sm:$0xff]
    %v271 = vld [vmem:[#allocation5 + $0x2c8] sm:$0xff]
    %v272 = vld [vmem:[#allocation5 + $0x2d0] sm:$0xff]
    %v273 = vld [vmem:[#allocation5 + $0x2d8] sm:$0xff]
    %v274 = vld [vmem:[#allocation5 + $0x2e0] sm:$0xff]
    %v275 = vld [vmem:[#allocation5 + $0x2e8] sm:$0xff]
    %v276 = vld [vmem:[#allocation5 + $0x2f0] sm:$0xff]
    %v277 = vld [vmem:[#allocation5 + $0x2f8] sm:$0xff]
    %v278 = vld [vmem:[#allocation5 + $0x300] sm:$0xff]
    %v279 = vld [vmem:[#allocation5 + $0x308] sm:$0xff]
    %v280 = vld [vmem:[#allocation5 + $0x310] sm:$0xff]
    %v281 = vld [vmem:[#allocation5 + $0x318] sm:$0xff]
    %v282 = vld [vmem:[#allocation5 + $0x320] sm:$0xff]
    %v283 = vld [vmem:[#allocation5 + $0x328] sm:$0xff]
    %v284 = vld [vmem:[#allocation5 + $0x330] sm:$0xff]
    %v285 = vld [vmem:[#allocation5 + $0x338] sm:$0xff]
    %v286 = vld [vmem:[#allocation5 + $0x340] sm:$0xff]
    %v287 = vld [vmem:[#allocation5 + $0x348] sm:$0xff]
    %v288 = vld [vmem:[#allocation5 + $0x350] sm:$0xff]
    %v289 = vld [vmem:[#allocation5 + $0x358] sm:$0xff]
    %v290 = vld [vmem:[#allocation5 + $0x360] sm:$0xff]
    %v291 = vld [vmem:[#allocation5 + $0x368] sm:$0xff]
    %v292 = vld [vmem:[#allocation5 + $0x370] sm:$0xff]
    %v293 = vld [vmem:[#allocation5 + $0x378] sm:$0xff]
    %v294 = vld [vmem:[#allocation5 + $0x380] sm:$0xff]
    %v295 = vld [vmem:[#allocation5 + $0x388] sm:$0xff]
    %v296 = vld [vmem:[#allocation5 + $0x390] sm:$0xff]
    %v297 = vld [vmem:[#allocation5 + $0x398] sm:$0xff]
    %v298 = vld [vmem:[#allocation5 + $0x3a0] sm:$0xff]
    %v299 = vld [vmem:[#allocation5 + $0x3a8] sm:$0xff]
    %v300 = vld [vmem:[#allocation5 + $0x3b0] sm:$0xff]
    %v301 = vld [vmem:[#allocation5 + $0x3b8] sm:$0xff]
    %v302 = vld [vmem:[#allocation5 + $0x3c0] sm:$0xff]
    %v303 = vld [vmem:[#allocation5 + $0x3c8] sm:$0xff]
    %v304 = vld [vmem:[#allocation5 + $0x3d0] sm:$0xff]
    %v305 = vld [vmem:[#allocation5 + $0x3d8] sm:$0xff]
    %v306 = vld [vmem:[#allocation5 + $0x3e0] sm:$0xff]
    %v307 = vld [vmem:[#allocation5 + $0x3e8] sm:$0xff]
    %v308 = vld [vmem:[#allocation5 + $0x3f0] sm:$0xff]
    %v309 = vld [vmem:[#allocation5 + $0x3f8] sm:$0xff]
    %v310 = vld [vmem:[#allocation5 + $0x400] sm:$0xff]
    %v311 = vld [vmem:[#allocation5 + $0x408] sm:$0xff]
    %v312 = vld [vmem:[#allocation5 + $0x410] sm:$0xff]
    %v313 = vld [vmem:[#allocation5 + $0x418] sm:$0xff]
    %v314 = vld [vmem:[#allocation5 + $0x420] sm:$0xff]
    %v315 = vld [vmem:[#allocation5 + $0x428] sm:$0xff]
    %v316 = vld [vmem:[#allocation5 + $0x430] sm:$0xff]
    %v317 = vld [vmem:[#allocation5 + $0x438] sm:$0xff]
    %v318 = vld [vmem:[#allocation5 + $0x440] sm:$0xff]
    %v319 = vld [vmem:[#allocation5 + $0x448] sm:$0xff]
    %v320 = vld [vmem:[#allocation5 + $0x450] sm:$0xff]
    %v321 = vld [vmem:[#allocation5 + $0x458] sm:$0xff]
    %v322 = vld [vmem:[#allocation5 + $0x460] sm:$0xff]
    %v323 = vld [vmem:[#allocation5 + $0x468] sm:$0xff]
    %v324 = vld [vmem:[#allocation5 + $0x470] sm:$0xff]
    %v325 = vld [vmem:[#allocation5 + $0x478] sm:$0xff]
    %v326 = vld [vmem:[#allocation5 + $0x480] sm:$0xff]
    %v327 = vld [vmem:[#allocation5 + $0x488] sm:$0xff]
    %v328 = vld [vmem:[#allocation5 + $0x490] sm:$0xff]
    %v329 = vld [vmem:[#allocation5 + $0x498] sm:$0xff]
    %v330 = vld [vmem:[#allocation5 + $0x4a0] sm:$0xff]
    %v331 = vld [vmem:[#allocation5 + $0x4a8] sm:$0xff]
    %v332 = vld [vmem:[#allocation5 + $0x4b0] sm:$0xff]
    %v333 = vld [vmem:[#allocation5 + $0x4b8] sm:$0xff]
    %v334 = vld [vmem:[#allocation5 + $0x4c0] sm:$0xff]
    %v335 = vld [vmem:[#allocation5 + $0x4c8] sm:$0xff]
    %v336 = vld [vmem:[#allocation5 + $0x4d0] sm:$0xff]
    %v337 = vld [vmem:[#allocation5 + $0x4d8] sm:$0xff]
    %v338 = vld [vmem:[#allocation5 + $0x4e0] sm:$0xff]
    %v339 = vld [vmem:[#allocation5 + $0x4e8] sm:$0xff]
    %v340 = vld [vmem:[#allocation5 + $0x4f0] sm:$0xff]
    %v341 = vld [vmem:[#allocation5 + $0x4f8] sm:$0xff]
    %v342 = vld [vmem:[#allocation5 + $0x500] sm:$0xff]
    %v343 = vld [vmem:[#allocation5 + $0x508] sm:$0xff]
    %v344 = vld [vmem:[#allocation5 + $0x510] sm:$0xff]
    %v345 = vld [vmem:[#allocation5 + $0x518] sm:$0xff]
    %v346 = vld [vmem:[#allocation5 + $0x520] sm:$0xff]
    %v347 = vld [vmem:[#allocation5 + $0x528] sm:$0xff]
    %v348 = vld [vmem:[#allocation5 + $0x530] sm:$0xff]
    %v349 = vld [vmem:[#allocation5 + $0x538] sm:$0xff]
    %v350 = vld [vmem:[#allocation5 + $0x540] sm:$0xff]
    %v351 = vld [vmem:[#allocation5 + $0x548] sm:$0xff]
    %v352 = vld [vmem:[#allocation5 + $0x550] sm:$0xff]
    %v353 = vld [vmem:[#allocation5 + $0x558] sm:$0xff]
    %v354 = vld [vmem:[#allocation5 + $0x560] sm:$0xff]
    %v355 = vld [vmem:[#allocation5 + $0x568] sm:$0xff]
    %v356 = vld [vmem:[#allocation5 + $0x570] sm:$0xff]
    %v357 = vld [vmem:[#allocation5 + $0x578] sm:$0xff]
    %v358 = vld [vmem:[#allocation5 + $0x580] sm:$0xff]
    %v359 = vld [vmem:[#allocation5 + $0x588] sm:$0xff]
    %v360 = vld [vmem:[#allocation5 + $0x590] sm:$0xff]
    %v361 = vld [vmem:[#allocation5 + $0x598] sm:$0xff]
    %v362 = vld [vmem:[#allocation5 + $0x5a0] sm:$0xff]
    %v363 = vld [vmem:[#allocation5 + $0x5a8] sm:$0xff]
    %v364 = vld [vmem:[#allocation5 + $0x5b0] sm:$0xff]
    %v365 = vld [vmem:[#allocation5 + $0x5b8] sm:$0xff]
    %v366 = vld [vmem:[#allocation5 + $0x5c0] sm:$0xff]
    %v367 = vld [vmem:[#allocation5 + $0x5c8] sm:$0xff]
    %v368 = vld [vmem:[#allocation5 + $0x5d0] sm:$0xff]
    %v369 = vld [vmem:[#allocation5 + $0x5d8] sm:$0xff]
    %v370 = vld [vmem:[#allocation5 + $0x5e0] sm:$0xff]
    %v371 = vld [vmem:[#allocation5 + $0x5e8] sm:$0xff]
    %v372 = vld [vmem:[#allocation5 + $0x5f0] sm:$0xff]
    %v373 = vld [vmem:[#allocation5 + $0x5f8] sm:$0xff]
    %v374 = vld [vmem:[#allocation5 + $0x600] sm:$0xff]
    %v375 = vld [vmem:[#allocation5 + $0x608] sm:$0xff]
    %v376 = vld [vmem:[#allocation5 + $0x610] sm:$0xff]
    %v377 = vld [vmem:[#allocation5 + $0x618] sm:$0xff]
    %v378 = vld [vmem:[#allocation5 + $0x620] sm:$0xff]
    %v379 = vld [vmem:[#allocation5 + $0x628] sm:$0xff]
    %v380 = vld [vmem:[#allocation5 + $0x630] sm:$0xff]
    %v381 = vld [vmem:[#allocation5 + $0x638] sm:$0xff]
    %v382 = vld [vmem:[#allocation5 + $0x640] sm:$0xff]
    %v383 = vld [vmem:[#allocation5 + $0x648] sm:$0xff]
    %v384 = vld [vmem:[#allocation5 + $0x650] sm:$0xff]
    %v385 = vld [vmem:[#allocation5 + $0x658] sm:$0xff]
    %v386 = vld [vmem:[#allocation5 + $0x660] sm:$0xff]
    %v387 = vld [vmem:[#allocation5 + $0x668] sm:$0xff]
    %v388 = vld [vmem:[#allocation5 + $0x670] sm:$0xff]
    %v389 = vld [vmem:[#allocation5 + $0x678] sm:$0xff]
    %v390 = vld [vmem:[#allocation5 + $0x680] sm:$0xff]
    %v391 = vld [vmem:[#allocation5 + $0x688] sm:$0xff]
    %v392 = vld [vmem:[#allocation5 + $0x690] sm:$0xff]
    %v393 = vld [vmem:[#allocation5 + $0x698] sm:$0xff]
    %v394 = vld [vmem:[#allocation5 + $0x6a0] sm:$0xff]
    %v395 = vld [vmem:[#allocation5 + $0x6a8] sm:$0xff]
    %v396 = vld [vmem:[#allocation5 + $0x6b0] sm:$0xff]
    %v397 = vld [vmem:[#allocation5 + $0x6b8] sm:$0xff]
    %v398 = vld [vmem:[#allocation5 + $0x6c0] sm:$0xff]
    %v399 = vld [vmem:[#allocation5 + $0x6c8] sm:$0xff]
    %v400 = vld [vmem:[#allocation5 + $0x6d0] sm:$0xff]
    %v401 = vld [vmem:[#allocation5 + $0x6d8] sm:$0xff]
    %v402 = vld [vmem:[#allocation5 + $0x6e0] sm:$0xff]
    %v403 = vld [vmem:[#allocation5 + $0x6e8] sm:$0xff]
    %v404 = vld [vmem:[#allocation5 + $0x6f0] sm:$0xff]
    %v405 = vld [vmem:[#allocation5 + $0x6f8] sm:$0xff]
    %v406 = vld [vmem:[#allocation5 + $0x700] sm:$0xff]
    %v407 = vld [vmem:[#allocation5 + $0x708] sm:$0xff]
    %v408 = vld [vmem:[#allocation5 + $0x710] sm:$0xff]
    %v409 = vld [vmem:[#allocation5 + $0x718] sm:$0xff]
    %v410 = vld [vmem:[#allocation5 + $0x720] sm:$0xff]
    %v411 = vld [vmem:[#allocation5 + $0x728] sm:$0xff]
    %v412 = vld [vmem:[#allocation5 + $0x730] sm:$0xff]
    %v413 = vld [vmem:[#allocation5 + $0x738] sm:$0xff]
    %v414 = vld [vmem:[#allocation5 + $0x740] sm:$0xff]
    %v415 = vld [vmem:[#allocation5 + $0x748] sm:$0xff]
    %v416 = vld [vmem:[#allocation5 + $0x750] sm:$0xff]
    %v417 = vld [vmem:[#allocation5 + $0x758] sm:$0xff]
    %v418 = vld [vmem:[#allocation5 + $0x760] sm:$0xff]
    %v419 = vld [vmem:[#allocation5 + $0x768] sm:$0xff]
    %v420 = vld [vmem:[#allocation5 + $0x770] sm:$0xff]
    %v421 = vld [vmem:[#allocation5 + $0x778] sm:$0xff]
    %v422 = vld [vmem:[#allocation5 + $0x780] sm:$0xff]
    %v423 = vld [vmem:[#allocation5 + $0x788] sm:$0xff]
    %v424 = vld [vmem:[#allocation5 + $0x790] sm:$0xff]
    %v425 = vld [vmem:[#allocation5 + $0x798] sm:$0xff]
    %v426 = vld [vmem:[#allocation5 + $0x7a0] sm:$0xff]
    %v427 = vld [vmem:[#allocation5 + $0x7a8] sm:$0xff]
    %v428 = vld [vmem:[#allocation5 + $0x7b0] sm:$0xff]
    %v429 = vld [vmem:[#allocation5 + $0x7b8] sm:$0xff]
    %v430 = vld [vmem:[#allocation5 + $0x7c0] sm:$0xff]
    %v431 = vld [vmem:[#allocation5 + $0x7c8] sm:$0xff]
    %v432 = vld [vmem:[#allocation5 + $0x7d0] sm:$0xff]
    %v433 = vld [vmem:[#allocation5 + $0x7d8] sm:$0xff]
    %v434 = vld [vmem:[#allocation5 + $0x7e0] sm:$0xff]
    %v435 = vld [vmem:[#allocation5 + $0x7e8] sm:$0xff]
    %v436 = vld [vmem:[#allocation5 + $0x7f0] sm:$0xff]
    %v437 = vld [vmem:[#allocation5 + $0x7f8] sm:$0xff]
    %v438 = vld [vmem:[#allocation7] sm:$0xf]
    %v440 = vperm.slane %v438, 0
    %v441 = vperm.slane %v438, 1
    %v442 = vperm.slane %v438, 2
    %v443 = vperm.slane %v438, 3
    %v704 = vunpack.c.l.b16 %v182
    %v705 = vunpack.c.h.b16 %v182
    %v706 = vunpack.c.l.b16 %v183
    %v707 = vunpack.c.h.b16 %v183
    %v708 = vunpack.c.l.b16 %v184
    %v709 = vunpack.c.h.b16 %v184
    %v710 = vunpack.c.l.b16 %v185
    %v711 = vunpack.c.h.b16 %v185
    %v712 = vunpack.c.l.b16 %v186
    %v713 = vunpack.c.h.b16 %v186
    %v714 = vunpack.c.l.b16 %v187
    %v715 = vunpack.c.h.b16 %v187
    %v716 = vunpack.c.l.b16 %v188
    %v717 = vunpack.c.h.b16 %v188
    %v718 = vunpack.c.l.b16 %v189
    %v719 = vunpack.c.h.b16 %v189
    %v720 = vunpack.c.l.b16 %v190
    %v721 = vunpack.c.h.b16 %v190
    %v722 = vunpack.c.l.b16 %v191
    %v723 = vunpack.c.h.b16 %v191
    %v724 = vunpack.c.l.b16 %v192
    %v725 = vunpack.c.h.b16 %v192
    %v726 = vunpack.c.l.b16 %v193
    %v727 = vunpack.c.h.b16 %v193
    %v728 = vunpack.c.l.b16 %v194
    %v729 = vunpack.c.h.b16 %v194
    %v730 = vunpack.c.l.b16 %v195
    %v731 = vunpack.c.h.b16 %v195
    %v732 = vunpack.c.l.b16 %v196
    %v733 = vunpack.c.h.b16 %v196
    %v734 = vunpack.c.l.b16 %v197
    %v735 = vunpack.c.h.b16 %v197
    %v736 = vunpack.c.l.b16 %v198
    %v737 = vunpack.c.h.b16 %v198
    %v738 = vunpack.c.l.b16 %v199
    %v739 = vunpack.c.h.b16 %v199
    %v740 = vunpack.c.l.b16 %v200
    %v741 = vunpack.c.h.b16 %v200
    %v742 = vunpack.c.l.b16 %v201
    %v743 = vunpack.c.h.b16 %v201
    %v744 = vunpack.c.l.b16 %v202
    %v745 = vunpack.c.h.b16 %v202
    %v746 = vunpack.c.l.b16 %v203
    %v747 = vunpack.c.h.b16 %v203
    %v748 = vunpack.c.l.b16 %v204
    %v749 = vunpack.c.h.b16 %v204
    %v750 = vunpack.c.l.b16 %v205
    %v751 = vunpack.c.h.b16 %v205
    %v752 = vunpack.c.l.b16 %v206
    %v753 = vunpack.c.h.b16 %v206
    %v754 = vunpack.c.l.b16 %v207
    %v755 = vunpack.c.h.b16 %v207
    %v756 = vunpack.c.l.b16 %v208
    %v757 = vunpack.c.h.b16 %v208
    %v758 = vunpack.c.l.b16 %v209
    %v759 = vunpack.c.h.b16 %v209
    %v760 = vunpack.c.l.b16 %v210
    %v761 = vunpack.c.h.b16 %v210
    %v762 = vunpack.c.l.b16 %v211
    %v763 = vunpack.c.h.b16 %v211
    %v764 = vunpack.c.l.b16 %v212
    %v765 = vunpack.c.h.b16 %v212
    %v766 = vunpack.c.l.b16 %v213
    %v767 = vunpack.c.h.b16 %v213
    %v768 = vunpack.c.l.b16 %v214
    %v769 = vunpack.c.h.b16 %v214
    %v770 = vunpack.c.l.b16 %v215
    %v771 = vunpack.c.h.b16 %v215
    %v772 = vunpack.c.l.b16 %v216
    %v773 = vunpack.c.h.b16 %v216
    %v774 = vunpack.c.l.b16 %v217
    %v775 = vunpack.c.h.b16 %v217
    %v776 = vunpack.c.l.b16 %v218
    %v777 = vunpack.c.h.b16 %v218
    %v778 = vunpack.c.l.b16 %v219
    %v779 = vunpack.c.h.b16 %v219
    %v780 = vunpack.c.l.b16 %v220
    %v781 = vunpack.c.h.b16 %v220
    %v782 = vunpack.c.l.b16 %v221
    %v783 = vunpack.c.h.b16 %v221
    %v784 = vunpack.c.l.b16 %v222
    %v785 = vunpack.c.h.b16 %v222
    %v786 = vunpack.c.l.b16 %v223
    %v787 = vunpack.c.h.b16 %v223
    %v788 = vunpack.c.l.b16 %v224
    %v789 = vunpack.c.h.b16 %v224
    %v790 = vunpack.c.l.b16 %v225
    %v791 = vunpack.c.h.b16 %v225
    %v792 = vunpack.c.l.b16 %v226
    %v793 = vunpack.c.h.b16 %v226
    %v794 = vunpack.c.l.b16 %v227
    %v795 = vunpack.c.h.b16 %v227
    %v796 = vunpack.c.l.b16 %v228
    %v797 = vunpack.c.h.b16 %v228
    %v798 = vunpack.c.l.b16 %v229
    %v799 = vunpack.c.h.b16 %v229
    %v800 = vunpack.c.l.b16 %v230
    %v801 = vunpack.c.h.b16 %v230
    %v802 = vunpack.c.l.b16 %v231
    %v803 = vunpack.c.h.b16 %v231
    %v804 = vunpack.c.l.b16 %v232
    %v805 = vunpack.c.h.b16 %v232
    %v806 = vunpack.c.l.b16 %v233
    %v807 = vunpack.c.h.b16 %v233
    %v808 = vunpack.c.l.b16 %v234
    %v809 = vunpack.c.h.b16 %v234
    %v810 = vunpack.c.l.b16 %v235
    %v811 = vunpack.c.h.b16 %v235
    %v812 = vunpack.c.l.b16 %v236
    %v813 = vunpack.c.h.b16 %v236
    %v814 = vunpack.c.l.b16 %v237
    %v815 = vunpack.c.h.b16 %v237
    %v816 = vunpack.c.l.b16 %v238
    %v817 = vunpack.c.h.b16 %v238
    %v818 = vunpack.c.l.b16 %v239
    %v819 = vunpack.c.h.b16 %v239
    %v820 = vunpack.c.l.b16 %v240
    %v821 = vunpack.c.h.b16 %v240
    %v822 = vunpack.c.l.b16 %v241
    %v823 = vunpack.c.h.b16 %v241
    %v824 = vunpack.c.l.b16 %v242
    %v825 = vunpack.c.h.b16 %v242
    %v826 = vunpack.c.l.b16 %v243
    %v827 = vunpack.c.h.b16 %v243
    %v828 = vunpack.c.l.b16 %v244
    %v829 = vunpack.c.h.b16 %v244
    %v830 = vunpack.c.l.b16 %v245
    %v831 = vunpack.c.h.b16 %v245
    %v832 = vunpack.c.l.b16 %v246
    %v833 = vunpack.c.h.b16 %v246
    %v834 = vunpack.c.l.b16 %v247
    %v835 = vunpack.c.h.b16 %v247
    %v836 = vunpack.c.l.b16 %v248
    %v837 = vunpack.c.h.b16 %v248
    %v838 = vunpack.c.l.b16 %v249
    %v839 = vunpack.c.h.b16 %v249
    %v840 = vunpack.c.l.b16 %v250
    %v841 = vunpack.c.h.b16 %v250
    %v842 = vunpack.c.l.b16 %v251
    %v843 = vunpack.c.h.b16 %v251
    %v844 = vunpack.c.l.b16 %v252
    %v845 = vunpack.c.h.b16 %v252
    %v846 = vunpack.c.l.b16 %v253
    %v847 = vunpack.c.h.b16 %v253
    %v848 = vunpack.c.l.b16 %v254
    %v849 = vunpack.c.h.b16 %v254
    %v850 = vunpack.c.l.b16 %v255
    %v851 = vunpack.c.h.b16 %v255
    %v852 = vunpack.c.l.b16 %v256
    %v853 = vunpack.c.h.b16 %v256
    %v854 = vunpack.c.l.b16 %v257
    %v855 = vunpack.c.h.b16 %v257
    %v856 = vunpack.c.l.b16 %v258
    %v857 = vunpack.c.h.b16 %v258
    %v858 = vunpack.c.l.b16 %v259
    %v859 = vunpack.c.h.b16 %v259
    %v860 = vunpack.c.l.b16 %v260
    %v861 = vunpack.c.h.b16 %v260
    %v862 = vunpack.c.l.b16 %v261
    %v863 = vunpack.c.h.b16 %v261
    %v864 = vunpack.c.l.b16 %v262
    %v865 = vunpack.c.h.b16 %v262
    %v866 = vunpack.c.l.b16 %v263
    %v867 = vunpack.c.h.b16 %v263
    %v868 = vunpack.c.l.b16 %v264
    %v869 = vunpack.c.h.b16 %v264
    %v870 = vunpack.c.l.b16 %v265
    %v871 = vunpack.c.h.b16 %v265
    %v872 = vunpack.c.l.b16 %v266
    %v873 = vunpack.c.h.b16 %v266
    %v874 = vunpack.c.l.b16 %v267
    %v875 = vunpack.c.h.b16 %v267
    %v876 = vunpack.c.l.b16 %v268
    %v877 = vunpack.c.h.b16 %v268
    %v878 = vunpack.c.l.b16 %v269
    %v879 = vunpack.c.h.b16 %v269
    %v880 = vunpack.c.l.b16 %v270
    %v881 = vunpack.c.h.b16 %v270
    %v882 = vunpack.c.l.b16 %v271
    %v883 = vunpack.c.h.b16 %v271
    %v884 = vunpack.c.l.b16 %v272
    %v885 = vunpack.c.h.b16 %v272
    %v886 = vunpack.c.l.b16 %v273
    %v887 = vunpack.c.h.b16 %v273
    %v888 = vunpack.c.l.b16 %v274
    %v889 = vunpack.c.h.b16 %v274
    %v890 = vunpack.c.l.b16 %v275
    %v891 = vunpack.c.h.b16 %v275
    %v892 = vunpack.c.l.b16 %v276
    %v893 = vunpack.c.h.b16 %v276
    %v894 = vunpack.c.l.b16 %v277
    %v895 = vunpack.c.h.b16 %v277
    %v896 = vunpack.c.l.b16 %v278
    %v897 = vunpack.c.h.b16 %v278
    %v898 = vunpack.c.l.b16 %v279
    %v899 = vunpack.c.h.b16 %v279
    %v900 = vunpack.c.l.b16 %v280
    %v901 = vunpack.c.h.b16 %v280
    %v902 = vunpack.c.l.b16 %v281
    %v903 = vunpack.c.h.b16 %v281
    %v904 = vunpack.c.l.b16 %v282
    %v905 = vunpack.c.h.b16 %v282
    %v906 = vunpack.c.l.b16 %v283
    %v907 = vunpack.c.h.b16 %v283
    %v908 = vunpack.c.l.b16 %v284
    %v909 = vunpack.c.h.b16 %v284
    %v910 = vunpack.c.l.b16 %v285
    %v911 = vunpack.c.h.b16 %v285
    %v912 = vunpack.c.l.b16 %v286
    %v913 = vunpack.c.h.b16 %v286
    %v914 = vunpack.c.l.b16 %v287
    %v915 = vunpack.c.h.b16 %v287
    %v916 = vunpack.c.l.b16 %v288
    %v917 = vunpack.c.h.b16 %v288
    %v918 = vunpack.c.l.b16 %v289
    %v919 = vunpack.c.h.b16 %v289
    %v920 = vunpack.c.l.b16 %v290
    %v921 = vunpack.c.h.b16 %v290
    %v922 = vunpack.c.l.b16 %v291
    %v923 = vunpack.c.h.b16 %v291
    %v924 = vunpack.c.l.b16 %v292
    %v925 = vunpack.c.h.b16 %v292
    %v926 = vunpack.c.l.b16 %v293
    %v927 = vunpack.c.h.b16 %v293
    %v928 = vunpack.c.l.b16 %v294
    %v929 = vunpack.c.h.b16 %v294
    %v930 = vunpack.c.l.b16 %v295
    %v931 = vunpack.c.h.b16 %v295
    %v932 = vunpack.c.l.b16 %v296
    %v933 = vunpack.c.h.b16 %v296
    %v934 = vunpack.c.l.b16 %v297
    %v935 = vunpack.c.h.b16 %v297
    %v936 = vunpack.c.l.b16 %v298
    %v937 = vunpack.c.h.b16 %v298
    %v938 = vunpack.c.l.b16 %v299
    %v939 = vunpack.c.h.b16 %v299
    %v940 = vunpack.c.l.b16 %v300
    %v941 = vunpack.c.h.b16 %v300
    %v942 = vunpack.c.l.b16 %v301
    %v943 = vunpack.c.h.b16 %v301
    %v944 = vunpack.c.l.b16 %v302
    %v945 = vunpack.c.h.b16 %v302
    %v946 = vunpack.c.l.b16 %v303
    %v947 = vunpack.c.h.b16 %v303
    %v948 = vunpack.c.l.b16 %v304
    %v949 = vunpack.c.h.b16 %v304
    %v950 = vunpack.c.l.b16 %v305
    %v951 = vunpack.c.h.b16 %v305
    %v952 = vunpack.c.l.b16 %v306
    %v953 = vunpack.c.h.b16 %v306
    %v954 = vunpack.c.l.b16 %v307
    %v955 = vunpack.c.h.b16 %v307
    %v956 = vunpack.c.l.b16 %v308
    %v957 = vunpack.c.h.b16 %v308
    %v958 = vunpack.c.l.b16 %v309
    %v959 = vunpack.c.h.b16 %v309
    %v960 = vunpack.c.l.b16 %v310
    %v961 = vunpack.c.h.b16 %v310
    %v962 = vunpack.c.l.b16 %v311
    %v963 = vunpack.c.h.b16 %v311
    %v964 = vunpack.c.l.b16 %v312
    %v965 = vunpack.c.h.b16 %v312
    %v966 = vunpack.c.l.b16 %v313
    %v967 = vunpack.c.h.b16 %v313
    %v968 = vunpack.c.l.b16 %v314
    %v969 = vunpack.c.h.b16 %v314
    %v970 = vunpack.c.l.b16 %v315
    %v971 = vunpack.c.h.b16 %v315
    %v972 = vunpack.c.l.b16 %v316
    %v973 = vunpack.c.h.b16 %v316
    %v974 = vunpack.c.l.b16 %v317
    %v975 = vunpack.c.h.b16 %v317
    %v976 = vunpack.c.l.b16 %v318
    %v977 = vunpack.c.h.b16 %v318
    %v978 = vunpack.c.l.b16 %v319
    %v979 = vunpack.c.h.b16 %v319
    %v980 = vunpack.c.l.b16 %v320
    %v981 = vunpack.c.h.b16 %v320
    %v982 = vunpack.c.l.b16 %v321
    %v983 = vunpack.c.h.b16 %v321
    %v984 = vunpack.c.l.b16 %v322
    %v985 = vunpack.c.h.b16 %v322
    %v986 = vunpack.c.l.b16 %v323
    %v987 = vunpack.c.h.b16 %v323
    %v988 = vunpack.c.l.b16 %v324
    %v989 = vunpack.c.h.b16 %v324
    %v990 = vunpack.c.l.b16 %v325
    %v991 = vunpack.c.h.b16 %v325
    %v992 = vunpack.c.l.b16 %v326
    %v993 = vunpack.c.h.b16 %v326
    %v994 = vunpack.c.l.b16 %v327
    %v995 = vunpack.c.h.b16 %v327
    %v996 = vunpack.c.l.b16 %v328
    %v997 = vunpack.c.h.b16 %v328
    %v998 = vunpack.c.l.b16 %v329
    %v999 = vunpack.c.h.b16 %v329
    %v1000 = vunpack.c.l.b16 %v330
    %v1001 = vunpack.c.h.b16 %v330
    %v1002 = vunpack.c.l.b16 %v331
    %v1003 = vunpack.c.h.b16 %v331
    %v1004 = vunpack.c.l.b16 %v332
    %v1005 = vunpack.c.h.b16 %v332
    %v1006 = vunpack.c.l.b16 %v333
    %v1007 = vunpack.c.h.b16 %v333
    %v1008 = vunpack.c.l.b16 %v334
    %v1009 = vunpack.c.h.b16 %v334
    %v1010 = vunpack.c.l.b16 %v335
    %v1011 = vunpack.c.h.b16 %v335
    %v1012 = vunpack.c.l.b16 %v336
    %v1013 = vunpack.c.h.b16 %v336
    %v1014 = vunpack.c.l.b16 %v337
    %v1015 = vunpack.c.h.b16 %v337
    %v1016 = vunpack.c.l.b16 %v338
    %v1017 = vunpack.c.h.b16 %v338
    %v1018 = vunpack.c.l.b16 %v339
    %v1019 = vunpack.c.h.b16 %v339
    %v1020 = vunpack.c.l.b16 %v340
    %v1021 = vunpack.c.h.b16 %v340
    %v1022 = vunpack.c.l.b16 %v341
    %v1023 = vunpack.c.h.b16 %v341
    %v1024 = vunpack.c.l.b16 %v342
    %v1025 = vunpack.c.h.b16 %v342
    %v1026 = vunpack.c.l.b16 %v343
    %v1027 = vunpack.c.h.b16 %v343
    %v1028 = vunpack.c.l.b16 %v344
    %v1029 = vunpack.c.h.b16 %v344
    %v1030 = vunpack.c.l.b16 %v345
    %v1031 = vunpack.c.h.b16 %v345
    %v1032 = vunpack.c.l.b16 %v346
    %v1033 = vunpack.c.h.b16 %v346
    %v1034 = vunpack.c.l.b16 %v347
    %v1035 = vunpack.c.h.b16 %v347
    %v1036 = vunpack.c.l.b16 %v348
    %v1037 = vunpack.c.h.b16 %v348
    %v1038 = vunpack.c.l.b16 %v349
    %v1039 = vunpack.c.h.b16 %v349
    %v1040 = vunpack.c.l.b16 %v350
    %v1041 = vunpack.c.h.b16 %v350
    %v1042 = vunpack.c.l.b16 %v351
    %v1043 = vunpack.c.h.b16 %v351
    %v1044 = vunpack.c.l.b16 %v352
    %v1045 = vunpack.c.h.b16 %v352
    %v1046 = vunpack.c.l.b16 %v353
    %v1047 = vunpack.c.h.b16 %v353
    %v1048 = vunpack.c.l.b16 %v354
    %v1049 = vunpack.c.h.b16 %v354
    %v1050 = vunpack.c.l.b16 %v355
    %v1051 = vunpack.c.h.b16 %v355
    %v1052 = vunpack.c.l.b16 %v356
    %v1053 = vunpack.c.h.b16 %v356
    %v1054 = vunpack.c.l.b16 %v357
    %v1055 = vunpack.c.h.b16 %v357
    %v1056 = vunpack.c.l.b16 %v358
    %v1057 = vunpack.c.h.b16 %v358
    %v1058 = vunpack.c.l.b16 %v359
    %v1059 = vunpack.c.h.b16 %v359
    %v1060 = vunpack.c.l.b16 %v360
    %v1061 = vunpack.c.h.b16 %v360
    %v1062 = vunpack.c.l.b16 %v361
    %v1063 = vunpack.c.h.b16 %v361
    %v1064 = vunpack.c.l.b16 %v362
    %v1065 = vunpack.c.h.b16 %v362
    %v1066 = vunpack.c.l.b16 %v363
    %v1067 = vunpack.c.h.b16 %v363
    %v1068 = vunpack.c.l.b16 %v364
    %v1069 = vunpack.c.h.b16 %v364
    %v1070 = vunpack.c.l.b16 %v365
    %v1071 = vunpack.c.h.b16 %v365
    %v1072 = vunpack.c.l.b16 %v366
    %v1073 = vunpack.c.h.b16 %v366
    %v1074 = vunpack.c.l.b16 %v367
    %v1075 = vunpack.c.h.b16 %v367
    %v1076 = vunpack.c.l.b16 %v368
    %v1077 = vunpack.c.h.b16 %v368
    %v1078 = vunpack.c.l.b16 %v369
    %v1079 = vunpack.c.h.b16 %v369
    %v1080 = vunpack.c.l.b16 %v370
    %v1081 = vunpack.c.h.b16 %v370
    %v1082 = vunpack.c.l.b16 %v371
    %v1083 = vunpack.c.h.b16 %v371
    %v1084 = vunpack.c.l.b16 %v372
    %v1085 = vunpack.c.h.b16 %v372
    %v1086 = vunpack.c.l.b16 %v373
    %v1087 = vunpack.c.h.b16 %v373
    %v1088 = vunpack.c.l.b16 %v374
    %v1089 = vunpack.c.h.b16 %v374
    %v1090 = vunpack.c.l.b16 %v375
    %v1091 = vunpack.c.h.b16 %v375
    %v1092 = vunpack.c.l.b16 %v376
    %v1093 = vunpack.c.h.b16 %v376
    %v1094 = vunpack.c.l.b16 %v377
    %v1095 = vunpack.c.h.b16 %v377
    %v1096 = vunpack.c.l.b16 %v378
    %v1097 = vunpack.c.h.b16 %v378
    %v1098 = vunpack.c.l.b16 %v379
    %v1099 = vunpack.c.h.b16 %v379
    %v1100 = vunpack.c.l.b16 %v380
    %v1101 = vunpack.c.h.b16 %v380
    %v1102 = vunpack.c.l.b16 %v381
    %v1103 = vunpack.c.h.b16 %v381
    %v1104 = vunpack.c.l.b16 %v382
    %v1105 = vunpack.c.h.b16 %v382
    %v1106 = vunpack.c.l.b16 %v383
    %v1107 = vunpack.c.h.b16 %v383
    %v1108 = vunpack.c.l.b16 %v384
    %v1109 = vunpack.c.h.b16 %v384
    %v1110 = vunpack.c.l.b16 %v385
    %v1111 = vunpack.c.h.b16 %v385
    %v1112 = vunpack.c.l.b16 %v386
    %v1113 = vunpack.c.h.b16 %v386
    %v1114 = vunpack.c.l.b16 %v387
    %v1115 = vunpack.c.h.b16 %v387
    %v1116 = vunpack.c.l.b16 %v388
    %v1117 = vunpack.c.h.b16 %v388
    %v1118 = vunpack.c.l.b16 %v389
    %v1119 = vunpack.c.h.b16 %v389
    %v1120 = vunpack.c.l.b16 %v390
    %v1121 = vunpack.c.h.b16 %v390
    %v1122 = vunpack.c.l.b16 %v391
    %v1123 = vunpack.c.h.b16 %v391
    %v1124 = vunpack.c.l.b16 %v392
    %v1125 = vunpack.c.h.b16 %v392
    %v1126 = vunpack.c.l.b16 %v393
    %v1127 = vunpack.c.h.b16 %v393
    %v1128 = vunpack.c.l.b16 %v394
    %v1129 = vunpack.c.h.b16 %v394
    %v1130 = vunpack.c.l.b16 %v395
    %v1131 = vunpack.c.h.b16 %v395
    %v1132 = vunpack.c.l.b16 %v396
    %v1133 = vunpack.c.h.b16 %v396
    %v1134 = vunpack.c.l.b16 %v397
    %v1135 = vunpack.c.h.b16 %v397
    %v1136 = vunpack.c.l.b16 %v398
    %v1137 = vunpack.c.h.b16 %v398
    %v1138 = vunpack.c.l.b16 %v399
    %v1139 = vunpack.c.h.b16 %v399
    %v1140 = vunpack.c.l.b16 %v400
    %v1141 = vunpack.c.h.b16 %v400
    %v1142 = vunpack.c.l.b16 %v401
    %v1143 = vunpack.c.h.b16 %v401
    %v1144 = vunpack.c.l.b16 %v402
    %v1145 = vunpack.c.h.b16 %v402
    %v1146 = vunpack.c.l.b16 %v403
    %v1147 = vunpack.c.h.b16 %v403
    %v1148 = vunpack.c.l.b16 %v404
    %v1149 = vunpack.c.h.b16 %v404
    %v1150 = vunpack.c.l.b16 %v405
    %v1151 = vunpack.c.h.b16 %v405
    %v1152 = vunpack.c.l.b16 %v406
    %v1153 = vunpack.c.h.b16 %v406
    %v1154 = vunpack.c.l.b16 %v407
    %v1155 = vunpack.c.h.b16 %v407
    %v1156 = vunpack.c.l.b16 %v408
    %v1157 = vunpack.c.h.b16 %v408
    %v1158 = vunpack.c.l.b16 %v409
    %v1159 = vunpack.c.h.b16 %v409
    %v1160 = vunpack.c.l.b16 %v410
    %v1161 = vunpack.c.h.b16 %v410
    %v1162 = vunpack.c.l.b16 %v411
    %v1163 = vunpack.c.h.b16 %v411
    %v1164 = vunpack.c.l.b16 %v412
    %v1165 = vunpack.c.h.b16 %v412
    %v1166 = vunpack.c.l.b16 %v413
    %v1167 = vunpack.c.h.b16 %v413
    %v1168 = vunpack.c.l.b16 %v414
    %v1169 = vunpack.c.h.b16 %v414
    %v1170 = vunpack.c.l.b16 %v415
    %v1171 = vunpack.c.h.b16 %v415
    %v1172 = vunpack.c.l.b16 %v416
    %v1173 = vunpack.c.h.b16 %v416
    %v1174 = vunpack.c.l.b16 %v417
    %v1175 = vunpack.c.h.b16 %v417
    %v1176 = vunpack.c.l.b16 %v418
    %v1177 = vunpack.c.h.b16 %v418
    %v1178 = vunpack.c.l.b16 %v419
    %v1179 = vunpack.c.h.b16 %v419
    %v1180 = vunpack.c.l.b16 %v420
    %v1181 = vunpack.c.h.b16 %v420
    %v1182 = vunpack.c.l.b16 %v421
    %v1183 = vunpack.c.h.b16 %v421
    %v1184 = vunpack.c.l.b16 %v422
    %v1185 = vunpack.c.h.b16 %v422
    %v1186 = vunpack.c.l.b16 %v423
    %v1187 = vunpack.c.h.b16 %v423
    %v1188 = vunpack.c.l.b16 %v424
    %v1189 = vunpack.c.h.b16 %v424
    %v1190 = vunpack.c.l.b16 %v425
    %v1191 = vunpack.c.h.b16 %v425
    %v1192 = vunpack.c.l.b16 %v426
    %v1193 = vunpack.c.h.b16 %v426
    %v1194 = vunpack.c.l.b16 %v427
    %v1195 = vunpack.c.h.b16 %v427
    %v1196 = vunpack.c.l.b16 %v428
    %v1197 = vunpack.c.h.b16 %v428
    %v1198 = vunpack.c.l.b16 %v429
    %v1199 = vunpack.c.h.b16 %v429
    %v1200 = vunpack.c.l.b16 %v430
    %v1201 = vunpack.c.h.b16 %v430
    %v1202 = vunpack.c.l.b16 %v431
    %v1203 = vunpack.c.h.b16 %v431
    %v1204 = vunpack.c.l.b16 %v432
    %v1205 = vunpack.c.h.b16 %v432
    %v1206 = vunpack.c.l.b16 %v433
    %v1207 = vunpack.c.h.b16 %v433
    %v1208 = vunpack.c.l.b16 %v434
    %v1209 = vunpack.c.h.b16 %v434
    %v1210 = vunpack.c.l.b16 %v435
    %v1211 = vunpack.c.h.b16 %v435
    %v1212 = vunpack.c.l.b16 %v436
    %v1213 = vunpack.c.h.b16 %v436
    %v1214 = vunpack.c.l.b16 %v437
    %v1215 = vunpack.c.h.b16 %v437
    %v1216 = vpack.c.b16 %v708, %v704
    %v1217 = vpack.c.b16 %v709, %v705
    %v1218 = vpack.c.b16 %v710, %v706
    %v1219 = vpack.c.b16 %v711, %v707
    %v1220 = vpack.c.b16 %v716, %v712
    %v1221 = vpack.c.b16 %v717, %v713
    %v1222 = vpack.c.b16 %v718, %v714
    %v1223 = vpack.c.b16 %v719, %v715
    %v1224 = vpack.c.b16 %v724, %v720
    %v1225 = vpack.c.b16 %v725, %v721
    %v1226 = vpack.c.b16 %v726, %v722
    %v1227 = vpack.c.b16 %v727, %v723
    %v1228 = vpack.c.b16 %v732, %v728
    %v1229 = vpack.c.b16 %v733, %v729
    %v1230 = vpack.c.b16 %v734, %v730
    %v1231 = vpack.c.b16 %v735, %v731
    %v1232 = vpack.c.b16 %v740, %v736
    %v1233 = vpack.c.b16 %v741, %v737
    %v1234 = vpack.c.b16 %v742, %v738
    %v1235 = vpack.c.b16 %v743, %v739
    %v1236 = vpack.c.b16 %v748, %v744
    %v1237 = vpack.c.b16 %v749, %v745
    %v1238 = vpack.c.b16 %v750, %v746
    %v1239 = vpack.c.b16 %v751, %v747
    %v1240 = vpack.c.b16 %v756, %v752
    %v1241 = vpack.c.b16 %v757, %v753
    %v1242 = vpack.c.b16 %v758, %v754
    %v1243 = vpack.c.b16 %v759, %v755
    %v1244 = vpack.c.b16 %v764, %v760
    %v1245 = vpack.c.b16 %v765, %v761
    %v1246 = vpack.c.b16 %v766, %v762
    %v1247 = vpack.c.b16 %v767, %v763
    %v1248 = vpack.c.b16 %v772, %v768
    %v1249 = vpack.c.b16 %v773, %v769
    %v1250 = vpack.c.b16 %v774, %v770
    %v1251 = vpack.c.b16 %v775, %v771
    %v1252 = vpack.c.b16 %v780, %v776
    %v1253 = vpack.c.b16 %v781, %v777
    %v1254 = vpack.c.b16 %v782, %v778
    %v1255 = vpack.c.b16 %v783, %v779
    %v1256 = vpack.c.b16 %v788, %v784
    %v1257 = vpack.c.b16 %v789, %v785
    %v1258 = vpack.c.b16 %v790, %v786
    %v1259 = vpack.c.b16 %v791, %v787
    %v1260 = vpack.c.b16 %v796, %v792
    %v1261 = vpack.c.b16 %v797, %v793
    %v1262 = vpack.c.b16 %v798, %v794
    %v1263 = vpack.c.b16 %v799, %v795
    %v1264 = vpack.c.b16 %v804, %v800
    %v1265 = vpack.c.b16 %v805, %v801
    %v1266 = vpack.c.b16 %v806, %v802
    %v1267 = vpack.c.b16 %v807, %v803
    %v1268 = vpack.c.b16 %v812, %v808
    %v1269 = vpack.c.b16 %v813, %v809
    %v1270 = vpack.c.b16 %v814, %v810
    %v1271 = vpack.c.b16 %v815, %v811
    %v1272 = vpack.c.b16 %v820, %v816
    %v1273 = vpack.c.b16 %v821, %v817
    %v1274 = vpack.c.b16 %v822, %v818
    %v1275 = vpack.c.b16 %v823, %v819
    %v1276 = vpack.c.b16 %v828, %v824
    %v1277 = vpack.c.b16 %v829, %v825
    %v1278 = vpack.c.b16 %v830, %v826
    %v1279 = vpack.c.b16 %v831, %v827
    %v1280 = vpack.c.b16 %v836, %v832
    %v1281 = vpack.c.b16 %v837, %v833
    %v1282 = vpack.c.b16 %v838, %v834
    %v1283 = vpack.c.b16 %v839, %v835
    %v1284 = vpack.c.b16 %v844, %v840
    %v1285 = vpack.c.b16 %v845, %v841
    %v1286 = vpack.c.b16 %v846, %v842
    %v1287 = vpack.c.b16 %v847, %v843
    %v1288 = vpack.c.b16 %v852, %v848
    %v1289 = vpack.c.b16 %v853, %v849
    %v1290 = vpack.c.b16 %v854, %v850
    %v1291 = vpack.c.b16 %v855, %v851
    %v1292 = vpack.c.b16 %v860, %v856
    %v1293 = vpack.c.b16 %v861, %v857
    %v1294 = vpack.c.b16 %v862, %v858
    %v1295 = vpack.c.b16 %v863, %v859
    %v1296 = vpack.c.b16 %v868, %v864
    %v1297 = vpack.c.b16 %v869, %v865
    %v1298 = vpack.c.b16 %v870, %v866
    %v1299 = vpack.c.b16 %v871, %v867
    %v1300 = vpack.c.b16 %v876, %v872
    %v1301 = vpack.c.b16 %v877, %v873
    %v1302 = vpack.c.b16 %v878, %v874
    %v1303 = vpack.c.b16 %v879, %v875
    %v1304 = vpack.c.b16 %v884, %v880
    %v1305 = vpack.c.b16 %v885, %v881
    %v1306 = vpack.c.b16 %v886, %v882
    %v1307 = vpack.c.b16 %v887, %v883
    %v1308 = vpack.c.b16 %v892, %v888
    %v1309 = vpack.c.b16 %v893, %v889
    %v1310 = vpack.c.b16 %v894, %v890
    %v1311 = vpack.c.b16 %v895, %v891
    %v1312 = vpack.c.b16 %v900, %v896
    %v1313 = vpack.c.b16 %v901, %v897
    %v1314 = vpack.c.b16 %v902, %v898
    %v1315 = vpack.c.b16 %v903, %v899
    %v1316 = vpack.c.b16 %v908, %v904
    %v1317 = vpack.c.b16 %v909, %v905
    %v1318 = vpack.c.b16 %v910, %v906
    %v1319 = vpack.c.b16 %v911, %v907
    %v1320 = vpack.c.b16 %v916, %v912
    %v1321 = vpack.c.b16 %v917, %v913
    %v1322 = vpack.c.b16 %v918, %v914
    %v1323 = vpack.c.b16 %v919, %v915
    %v1324 = vpack.c.b16 %v924, %v920
    %v1325 = vpack.c.b16 %v925, %v921
    %v1326 = vpack.c.b16 %v926, %v922
    %v1327 = vpack.c.b16 %v927, %v923
    %v1328 = vpack.c.b16 %v932, %v928
    %v1329 = vpack.c.b16 %v933, %v929
    %v1330 = vpack.c.b16 %v934, %v930
    %v1331 = vpack.c.b16 %v935, %v931
    %v1332 = vpack.c.b16 %v940, %v936
    %v1333 = vpack.c.b16 %v941, %v937
    %v1334 = vpack.c.b16 %v942, %v938
    %v1335 = vpack.c.b16 %v943, %v939
    %v1336 = vpack.c.b16 %v948, %v944
    %v1337 = vpack.c.b16 %v949, %v945
    %v1338 = vpack.c.b16 %v950, %v946
    %v1339 = vpack.c.b16 %v951, %v947
    %v1340 = vpack.c.b16 %v956, %v952
    %v1341 = vpack.c.b16 %v957, %v953
    %v1342 = vpack.c.b16 %v958, %v954
    %v1343 = vpack.c.b16 %v959, %v955
    %v1344 = vpack.c.b16 %v964, %v960
    %v1345 = vpack.c.b16 %v965, %v961
    %v1346 = vpack.c.b16 %v966, %v962
    %v1347 = vpack.c.b16 %v967, %v963
    %v1348 = vpack.c.b16 %v972, %v968
    %v1349 = vpack.c.b16 %v973, %v969
    %v1350 = vpack.c.b16 %v974, %v970
    %v1351 = vpack.c.b16 %v975, %v971
    %v1352 = vpack.c.b16 %v980, %v976
    %v1353 = vpack.c.b16 %v981, %v977
    %v1354 = vpack.c.b16 %v982, %v978
    %v1355 = vpack.c.b16 %v983, %v979
    %v1356 = vpack.c.b16 %v988, %v984
    %v1357 = vpack.c.b16 %v989, %v985
    %v1358 = vpack.c.b16 %v990, %v986
    %v1359 = vpack.c.b16 %v991, %v987
    %v1360 = vpack.c.b16 %v996, %v992
    %v1361 = vpack.c.b16 %v997, %v993
    %v1362 = vpack.c.b16 %v998, %v994
    %v1363 = vpack.c.b16 %v999, %v995
    %v1364 = vpack.c.b16 %v1004, %v1000
    %v1365 = vpack.c.b16 %v1005, %v1001
    %v1366 = vpack.c.b16 %v1006, %v1002
    %v1367 = vpack.c.b16 %v1007, %v1003
    %v1368 = vpack.c.b16 %v1012, %v1008
    %v1369 = vpack.c.b16 %v1013, %v1009
    %v1370 = vpack.c.b16 %v1014, %v1010
    %v1371 = vpack.c.b16 %v1015, %v1011
    %v1372 = vpack.c.b16 %v1020, %v1016
    %v1373 = vpack.c.b16 %v1021, %v1017
    %v1374 = vpack.c.b16 %v1022, %v1018
    %v1375 = vpack.c.b16 %v1023, %v1019
    %v1376 = vpack.c.b16 %v1028, %v1024
    %v1377 = vpack.c.b16 %v1029, %v1025
    %v1378 = vpack.c.b16 %v1030, %v1026
    %v1379 = vpack.c.b16 %v1031, %v1027
    %v1380 = vpack.c.b16 %v1036, %v1032
    %v1381 = vpack.c.b16 %v1037, %v1033
    %v1382 = vpack.c.b16 %v1038, %v1034
    %v1383 = vpack.c.b16 %v1039, %v1035
    %v1384 = vpack.c.b16 %v1044, %v1040
    %v1385 = vpack.c.b16 %v1045, %v1041
    %v1386 = vpack.c.b16 %v1046, %v1042
    %v1387 = vpack.c.b16 %v1047, %v1043
    %v1388 = vpack.c.b16 %v1052, %v1048
    %v1389 = vpack.c.b16 %v1053, %v1049
    %v1390 = vpack.c.b16 %v1054, %v1050
    %v1391 = vpack.c.b16 %v1055, %v1051
    %v1392 = vpack.c.b16 %v1060, %v1056
    %v1393 = vpack.c.b16 %v1061, %v1057
    %v1394 = vpack.c.b16 %v1062, %v1058
    %v1395 = vpack.c.b16 %v1063, %v1059
    %v1396 = vpack.c.b16 %v1068, %v1064
    %v1397 = vpack.c.b16 %v1069, %v1065
    %v1398 = vpack.c.b16 %v1070, %v1066
    %v1399 = vpack.c.b16 %v1071, %v1067
    %v1400 = vpack.c.b16 %v1076, %v1072
    %v1401 = vpack.c.b16 %v1077, %v1073
    %v1402 = vpack.c.b16 %v1078, %v1074
    %v1403 = vpack.c.b16 %v1079, %v1075
    %v1404 = vpack.c.b16 %v1084, %v1080
    %v1405 = vpack.c.b16 %v1085, %v1081
    %v1406 = vpack.c.b16 %v1086, %v1082
    %v1407 = vpack.c.b16 %v1087, %v1083
    %v1408 = vpack.c.b16 %v1092, %v1088
    %v1409 = vpack.c.b16 %v1093, %v1089
    %v1410 = vpack.c.b16 %v1094, %v1090
    %v1411 = vpack.c.b16 %v1095, %v1091
    %v1412 = vpack.c.b16 %v1100, %v1096
    %v1413 = vpack.c.b16 %v1101, %v1097
    %v1414 = vpack.c.b16 %v1102, %v1098
    %v1415 = vpack.c.b16 %v1103, %v1099
    %v1416 = vpack.c.b16 %v1108, %v1104
    %v1417 = vpack.c.b16 %v1109, %v1105
    %v1418 = vpack.c.b16 %v1110, %v1106
    %v1419 = vpack.c.b16 %v1111, %v1107
    %v1420 = vpack.c.b16 %v1116, %v1112
    %v1421 = vpack.c.b16 %v1117, %v1113
    %v1422 = vpack.c.b16 %v1118, %v1114
    %v1423 = vpack.c.b16 %v1119, %v1115
    %v1424 = vpack.c.b16 %v1124, %v1120
    %v1425 = vpack.c.b16 %v1125, %v1121
    %v1426 = vpack.c.b16 %v1126, %v1122
    %v1427 = vpack.c.b16 %v1127, %v1123
    %v1428 = vpack.c.b16 %v1132, %v1128
    %v1429 = vpack.c.b16 %v1133, %v1129
    %v1430 = vpack.c.b16 %v1134, %v1130
    %v1431 = vpack.c.b16 %v1135, %v1131
    %v1432 = vpack.c.b16 %v1140, %v1136
    %v1433 = vpack.c.b16 %v1141, %v1137
    %v1434 = vpack.c.b16 %v1142, %v1138
    %v1435 = vpack.c.b16 %v1143, %v1139
    %v1436 = vpack.c.b16 %v1148, %v1144
    %v1437 = vpack.c.b16 %v1149, %v1145
    %v1438 = vpack.c.b16 %v1150, %v1146
    %v1439 = vpack.c.b16 %v1151, %v1147
    %v1440 = vpack.c.b16 %v1156, %v1152
    %v1441 = vpack.c.b16 %v1157, %v1153
    %v1442 = vpack.c.b16 %v1158, %v1154
    %v1443 = vpack.c.b16 %v1159, %v1155
    %v1444 = vpack.c.b16 %v1164, %v1160
    %v1445 = vpack.c.b16 %v1165, %v1161
    %v1446 = vpack.c.b16 %v1166, %v1162
    %v1447 = vpack.c.b16 %v1167, %v1163
    %v1448 = vpack.c.b16 %v1172, %v1168
    %v1449 = vpack.c.b16 %v1173, %v1169
    %v1450 = vpack.c.b16 %v1174, %v1170
    %v1451 = vpack.c.b16 %v1175, %v1171
    %v1452 = vpack.c.b16 %v1180, %v1176
    %v1453 = vpack.c.b16 %v1181, %v1177
    %v1454 = vpack.c.b16 %v1182, %v1178
    %v1455 = vpack.c.b16 %v1183, %v1179
    %v1456 = vpack.c.b16 %v1188, %v1184
    %v1457 = vpack.c.b16 %v1189, %v1185
    %v1458 = vpack.c.b16 %v1190, %v1186
    %v1459 = vpack.c.b16 %v1191, %v1187
    %v1460 = vpack.c.b16 %v1196, %v1192
    %v1461 = vpack.c.b16 %v1197, %v1193
    %v1462 = vpack.c.b16 %v1198, %v1194
    %v1463 = vpack.c.b16 %v1199, %v1195
    %v1464 = vpack.c.b16 %v1204, %v1200
    %v1465 = vpack.c.b16 %v1205, %v1201
    %v1466 = vpack.c.b16 %v1206, %v1202
    %v1467 = vpack.c.b16 %v1207, %v1203
    %v1468 = vpack.c.b16 %v1212, %v1208
    %v1469 = vpack.c.b16 %v1213, %v1209
    %v1470 = vpack.c.b16 %v1214, %v1210
    %v1471 = vpack.c.b16 %v1215, %v1211
    %1728 = vmatpush.bf16.msra.mxu0 %v1244
    %1729 = vmatpush.bf16.msra.mxu0 %v1240
    %1730 = vmatpush.bf16.msra.mxu0 %v1236
    %1731 = vmatpush.bf16.msra.mxu0 %v1232
    %1732 = vmatpush.bf16.msra.mxu0 %v1228
    %1733 = vmatpush.bf16.msra.mxu0 %v1224
    %1734 = vmatpush.bf16.msra.mxu0 %v1220
    %1735 = vmatpush.bf16.msra.mxu0 %v1216
    %1736 = vmatmul.bf16.gmra.mxu0 %v174
    %v1737 = vpop.f32.mrf.mxu0
    %v1738 = vadd.f32 %v440, %v1737
    %v1739 = vpop.f32.mrf.mxu0
    %1740 = vdwg.mxu0
    %1741 = vmatpush.bf16.msra.mxu0 %v1276
    %1742 = vmatpush.bf16.msra.mxu0 %v1272
    %1743 = vmatpush.bf16.msra.mxu0 %v1268
    %1744 = vmatpush.bf16.msra.mxu0 %v1264
    %1745 = vmatpush.bf16.msra.mxu0 %v1260
    %1746 = vmatpush.bf16.msra.mxu0 %v1256
    %1747 = vmatpush.bf16.msra.mxu0 %v1252
    %1748 = vmatpush.bf16.msra.mxu0 %v1248
    %1749 = vmatmul.bf16.gmra.mxu0 %v175
    %v1750 = vpop.f32.mrf.mxu0
    %v1751 = vadd.f32 %v1738, %v1750
    %v1752 = vpop.f32.mrf.mxu0
    %1753 = vdwg.mxu0
    %1754 = vmatpush.bf16.msra.mxu0 %v1308
    %1755 = vmatpush.bf16.msra.mxu0 %v1304
    %1756 = vmatpush.bf16.msra.mxu0 %v1300
    %1757 = vmatpush.bf16.msra.mxu0 %v1296
    %1758 = vmatpush.bf16.msra.mxu0 %v1292
    %1759 = vmatpush.bf16.msra.mxu0 %v1288
    %1760 = vmatpush.bf16.msra.mxu0 %v1284
    %1761 = vmatpush.bf16.msra.mxu0 %v1280
    %1762 = vmatmul.bf16.gmra.mxu0 %v176
    %v1763 = vpop.f32.mrf.mxu0
    %v1764 = vadd.f32 %v1751, %v1763
    %v1765 = vpop.f32.mrf.mxu0
    %1766 = vdwg.mxu0
    %1767 = vmatpush.bf16.msra.mxu0 %v1340
    %1768 = vmatpush.bf16.msra.mxu0 %v1336
    %1769 = vmatpush.bf16.msra.mxu0 %v1332
    %1770 = vmatpush.bf16.msra.mxu0 %v1328
    %1771 = vmatpush.bf16.msra.mxu0 %v1324
    %1772 = vmatpush.bf16.msra.mxu0 %v1320
    %1773 = vmatpush.bf16.msra.mxu0 %v1316
    %1774 = vmatpush.bf16.msra.mxu0 %v1312
    %1775 = vmatmul.bf16.gmra.mxu0 %v177
    %v1776 = vpop.f32.mrf.mxu0
    %v1777 = vadd.f32 %v1764, %v1776
    %v1778 = vpop.f32.mrf.mxu0
    %1779 = vdwg.mxu0
    %1780 = vmatpush.bf16.msra.mxu0 %v1372
    %1781 = vmatpush.bf16.msra.mxu0 %v1368
    %1782 = vmatpush.bf16.msra.mxu0 %v1364
    %1783 = vmatpush.bf16.msra.mxu0 %v1360
    %1784 = vmatpush.bf16.msra.mxu0 %v1356
    %1785 = vmatpush.bf16.msra.mxu0 %v1352
    %1786 = vmatpush.bf16.msra.mxu0 %v1348
    %1787 = vmatpush.bf16.msra.mxu0 %v1344
    %1788 = vmatmul.bf16.gmra.mxu0 %v178
    %v1789 = vpop.f32.mrf.mxu0
    %v1790 = vadd.f32 %v1777, %v1789
    %v1791 = vpop.f32.mrf.mxu0
    %1792 = vdwg.mxu0
    %1793 = vmatpush.bf16.msra.mxu0 %v1404
    %1794 = vmatpush.bf16.msra.mxu0 %v1400
    %1795 = vmatpush.bf16.msra.mxu0 %v1396
    %1796 = vmatpush.bf16.msra.mxu0 %v1392
    %1797 = vmatpush.bf16.msra.mxu0 %v1388
    %1798 = vmatpush.bf16.msra.mxu0 %v1384
    %1799 = vmatpush.bf16.msra.mxu0 %v1380
    %1800 = vmatpush.bf16.msra.mxu0 %v1376
    %1801 = vmatmul.bf16.gmra.mxu0 %v179
    %v1802 = vpop.f32.mrf.mxu0
    %v1803 = vadd.f32 %v1790, %v1802
    %v1804 = vpop.f32.mrf.mxu0
    %1805 = vdwg.mxu0
    %1806 = vmatpush.bf16.msra.mxu0 %v1436
    %1807 = vmatpush.bf16.msra.mxu0 %v1432
    %1808 = vmatpush.bf16.msra.mxu0 %v1428
    %1809 = vmatpush.bf16.msra.mxu0 %v1424
    %1810 = vmatpush.bf16.msra.mxu0 %v1420
    %1811 = vmatpush.bf16.msra.mxu0 %v1416
    %1812 = vmatpush.bf16.msra.mxu0 %v1412
    %1813 = vmatpush.bf16.msra.mxu0 %v1408
    %1814 = vmatmul.bf16.gmra.mxu0 %v180
    %v1815 = vpop.f32.mrf.mxu0
    %v1816 = vadd.f32 %v1803, %v1815
    %v1817 = vpop.f32.mrf.mxu0
    %1818 = vdwg.mxu0
    %1819 = vmatpush.bf16.msra.mxu0 %v1468
    %1820 = vmatpush.bf16.msra.mxu0 %v1464
    %1821 = vmatpush.bf16.msra.mxu0 %v1460
    %1822 = vmatpush.bf16.msra.mxu0 %v1456
    %1823 = vmatpush.bf16.msra.mxu0 %v1452
    %1824 = vmatpush.bf16.msra.mxu0 %v1448
    %1825 = vmatpush.bf16.msra.mxu0 %v1444
    %1826 = vmatpush.bf16.msra.mxu0 %v1440
    %1827 = vmatmul.bf16.gmra.mxu0 %v181
    %v1828 = vpop.f32.mrf.mxu0
    %v1829 = vadd.f32 %v1816, %v1828
    %v1830 = vpop.f32.mrf.mxu0
    %1831 = vdwg.mxu0
    %1832 = vmatpush.bf16.msra.mxu0 %v1245
    %1833 = vmatpush.bf16.msra.mxu0 %v1241
    %1834 = vmatpush.bf16.msra.mxu0 %v1237
    %1835 = vmatpush.bf16.msra.mxu0 %v1233
    %1836 = vmatpush.bf16.msra.mxu0 %v1229
    %1837 = vmatpush.bf16.msra.mxu0 %v1225
    %1838 = vmatpush.bf16.msra.mxu0 %v1221
    %1839 = vmatpush.bf16.msra.mxu0 %v1217
    %1840 = vmatmul.bf16.gmra.mxu0 %v174
    %v1841 = vpop.f32.mrf.mxu0
    %v1842 = vadd.f32 %v441, %v1841
    %v1843 = vpop.f32.mrf.mxu0
    %1844 = vdwg.mxu0
    %1845 = vmatpush.bf16.msra.mxu0 %v1277
    %1846 = vmatpush.bf16.msra.mxu0 %v1273
    %1847 = vmatpush.bf16.msra.mxu0 %v1269
    %1848 = vmatpush.bf16.msra.mxu0 %v1265
    %1849 = vmatpush.bf16.msra.mxu0 %v1261
    %1850 = vmatpush.bf16.msra.mxu0 %v1257
    %1851 = vmatpush.bf16.msra.mxu0 %v1253
    %1852 = vmatpush.bf16.msra.mxu0 %v1249
    %1853 = vmatmul.bf16.gmra.mxu0 %v175
    %v1854 = vpop.f32.mrf.mxu0
    %v1855 = vadd.f32 %v1842, %v1854
    %v1856 = vpop.f32.mrf.mxu0
    %1857 = vdwg.mxu0
    %1858 = vmatpush.bf16.msra.mxu0 %v1309
    %1859 = vmatpush.bf16.msra.mxu0 %v1305
    %1860 = vmatpush.bf16.msra.mxu0 %v1301
    %1861 = vmatpush.bf16.msra.mxu0 %v1297
    %1862 = vmatpush.bf16.msra.mxu0 %v1293
    %1863 = vmatpush.bf16.msra.mxu0 %v1289
    %1864 = vmatpush.bf16.msra.mxu0 %v1285
    %1865 = vmatpush.bf16.msra.mxu0 %v1281
    %1866 = vmatmul.bf16.gmra.mxu0 %v176
    %v1867 = vpop.f32.mrf.mxu0
    %v1868 = vadd.f32 %v1855, %v1867
    %v1869 = vpop.f32.mrf.mxu0
    %1870 = vdwg.mxu0
    %1871 = vmatpush.bf16.msra.mxu0 %v1341
    %1872 = vmatpush.bf16.msra.mxu0 %v1337
    %1873 = vmatpush.bf16.msra.mxu0 %v1333
    %1874 = vmatpush.bf16.msra.mxu0 %v1329
    %1875 = vmatpush.bf16.msra.mxu0 %v1325
    %1876 = vmatpush.bf16.msra.mxu0 %v1321
    %1877 = vmatpush.bf16.msra.mxu0 %v1317
    %1878 = vmatpush.bf16.msra.mxu0 %v1313
    %1879 = vmatmul.bf16.gmra.mxu0 %v177
    %v1880 = vpop.f32.mrf.mxu0
    %v1881 = vadd.f32 %v1868, %v1880
    %v1882 = vpop.f32.mrf.mxu0
    %1883 = vdwg.mxu0
    %1884 = vmatpush.bf16.msra.mxu0 %v1373
    %1885 = vmatpush.bf16.msra.mxu0 %v1369
    %1886 = vmatpush.bf16.msra.mxu0 %v1365
    %1887 = vmatpush.bf16.msra.mxu0 %v1361
    %1888 = vmatpush.bf16.msra.mxu0 %v1357
    %1889 = vmatpush.bf16.msra.mxu0 %v1353
    %1890 = vmatpush.bf16.msra.mxu0 %v1349
    %1891 = vmatpush.bf16.msra.mxu0 %v1345
    %1892 = vmatmul.bf16.gmra.mxu0 %v178
    %v1893 = vpop.f32.mrf.mxu0
    %v1894 = vadd.f32 %v1881, %v1893
    %v1895 = vpop.f32.mrf.mxu0
    %1896 = vdwg.mxu0
    %1897 = vmatpush.bf16.msra.mxu0 %v1405
    %1898 = vmatpush.bf16.msra.mxu0 %v1401
    %1899 = vmatpush.bf16.msra.mxu0 %v1397
    %1900 = vmatpush.bf16.msra.mxu0 %v1393
    %1901 = vmatpush.bf16.msra.mxu0 %v1389
    %1902 = vmatpush.bf16.msra.mxu0 %v1385
    %1903 = vmatpush.bf16.msra.mxu0 %v1381
    %1904 = vmatpush.bf16.msra.mxu0 %v1377
    %1905 = vmatmul.bf16.gmra.mxu0 %v179
    %v1906 = vpop.f32.mrf.mxu0
    %v1907 = vadd.f32 %v1894, %v1906
    %v1908 = vpop.f32.mrf.mxu0
    %1909 = vdwg.mxu0
    %1910 = vmatpush.bf16.msra.mxu0 %v1437
    %1911 = vmatpush.bf16.msra.mxu0 %v1433
    %1912 = vmatpush.bf16.msra.mxu0 %v1429
    %1913 = vmatpush.bf16.msra.mxu0 %v1425
    %1914 = vmatpush.bf16.msra.mxu0 %v1421
    %1915 = vmatpush.bf16.msra.mxu0 %v1417
    %1916 = vmatpush.bf16.msra.mxu0 %v1413
    %1917 = vmatpush.bf16.msra.mxu0 %v1409
    %1918 = vmatmul.bf16.gmra.mxu0 %v180
    %v1919 = vpop.f32.mrf.mxu0
    %v1920 = vadd.f32 %v1907, %v1919
    %v1921 = vpop.f32.mrf.mxu0
    %1922 = vdwg.mxu0
    %1923 = vmatpush.bf16.msra.mxu0 %v1469
    %1924 = vmatpush.bf16.msra.mxu0 %v1465
    %1925 = vmatpush.bf16.msra.mxu0 %v1461
    %1926 = vmatpush.bf16.msra.mxu0 %v1457
    %1927 = vmatpush.bf16.msra.mxu0 %v1453
    %1928 = vmatpush.bf16.msra.mxu0 %v1449
    %1929 = vmatpush.bf16.msra.mxu0 %v1445
    %1930 = vmatpush.bf16.msra.mxu0 %v1441
    %1931 = vmatmul.bf16.gmra.mxu0 %v181
    %v1932 = vpop.f32.mrf.mxu0
    %v1933 = vadd.f32 %v1920, %v1932
    %v1934 = vpop.f32.mrf.mxu0
    %1935 = vdwg.mxu0
    %1936 = vmatpush.bf16.msra.mxu0 %v1246
    %1937 = vmatpush.bf16.msra.mxu0 %v1242
    %1938 = vmatpush.bf16.msra.mxu0 %v1238
    %1939 = vmatpush.bf16.msra.mxu0 %v1234
    %1940 = vmatpush.bf16.msra.mxu0 %v1230
    %1941 = vmatpush.bf16.msra.mxu0 %v1226
    %1942 = vmatpush.bf16.msra.mxu0 %v1222
    %1943 = vmatpush.bf16.msra.mxu0 %v1218
    %1944 = vmatmul.bf16.gmra.mxu0 %v174
    %v1945 = vpop.f32.mrf.mxu0
    %v1946 = vadd.f32 %v442, %v1945
    %v1947 = vpop.f32.mrf.mxu0
    %1948 = vdwg.mxu0
    %1949 = vmatpush.bf16.msra.mxu0 %v1278
    %1950 = vmatpush.bf16.msra.mxu0 %v1274
    %1951 = vmatpush.bf16.msra.mxu0 %v1270
    %1952 = vmatpush.bf16.msra.mxu0 %v1266
    %1953 = vmatpush.bf16.msra.mxu0 %v1262
    %1954 = vmatpush.bf16.msra.mxu0 %v1258
    %1955 = vmatpush.bf16.msra.mxu0 %v1254
    %1956 = vmatpush.bf16.msra.mxu0 %v1250
    %1957 = vmatmul.bf16.gmra.mxu0 %v175
    %v1958 = vpop.f32.mrf.mxu0
    %v1959 = vadd.f32 %v1946, %v1958
    %v1960 = vpop.f32.mrf.mxu0
    %1961 = vdwg.mxu0
    %1962 = vmatpush.bf16.msra.mxu0 %v1310
    %1963 = vmatpush.bf16.msra.mxu0 %v1306
    %1964 = vmatpush.bf16.msra.mxu0 %v1302
    %1965 = vmatpush.bf16.msra.mxu0 %v1298
    %1966 = vmatpush.bf16.msra.mxu0 %v1294
    %1967 = vmatpush.bf16.msra.mxu0 %v1290
    %1968 = vmatpush.bf16.msra.mxu0 %v1286
    %1969 = vmatpush.bf16.msra.mxu0 %v1282
    %1970 = vmatmul.bf16.gmra.mxu0 %v176
    %v1971 = vpop.f32.mrf.mxu0
    %v1972 = vadd.f32 %v1959, %v1971
    %v1973 = vpop.f32.mrf.mxu0
    %1974 = vdwg.mxu0
    %1975 = vmatpush.bf16.msra.mxu0 %v1342
    %1976 = vmatpush.bf16.msra.mxu0 %v1338
    %1977 = vmatpush.bf16.msra.mxu0 %v1334
    %1978 = vmatpush.bf16.msra.mxu0 %v1330
    %1979 = vmatpush.bf16.msra.mxu0 %v1326
    %1980 = vmatpush.bf16.msra.mxu0 %v1322
    %1981 = vmatpush.bf16.msra.mxu0 %v1318
    %1982 = vmatpush.bf16.msra.mxu0 %v1314
    %1983 = vmatmul.bf16.gmra.mxu0 %v177
    %v1984 = vpop.f32.mrf.mxu0
    %v1985 = vadd.f32 %v1972, %v1984
    %v1986 = vpop.f32.mrf.mxu0
    %1987 = vdwg.mxu0
    %1988 = vmatpush.bf16.msra.mxu0 %v1374
    %1989 = vmatpush.bf16.msra.mxu0 %v1370
    %1990 = vmatpush.bf16.msra.mxu0 %v1366
    %1991 = vmatpush.bf16.msra.mxu0 %v1362
    %1992 = vmatpush.bf16.msra.mxu0 %v1358
    %1993 = vmatpush.bf16.msra.mxu0 %v1354
    %1994 = vmatpush.bf16.msra.mxu0 %v1350
    %1995 = vmatpush.bf16.msra.mxu0 %v1346
    %1996 = vmatmul.bf16.gmra.mxu0 %v178
    %v1997 = vpop.f32.mrf.mxu0
    %v1998 = vadd.f32 %v1985, %v1997
    %v1999 = vpop.f32.mrf.mxu0
    %2000 = vdwg.mxu0
    %2001 = vmatpush.bf16.msra.mxu0 %v1406
    %2002 = vmatpush.bf16.msra.mxu0 %v1402
    %2003 = vmatpush.bf16.msra.mxu0 %v1398
    %2004 = vmatpush.bf16.msra.mxu0 %v1394
    %2005 = vmatpush.bf16.msra.mxu0 %v1390
    %2006 = vmatpush.bf16.msra.mxu0 %v1386
    %2007 = vmatpush.bf16.msra.mxu0 %v1382
    %2008 = vmatpush.bf16.msra.mxu0 %v1378
    %2009 = vmatmul.bf16.gmra.mxu0 %v179
    %v2010 = vpop.f32.mrf.mxu0
    %v2011 = vadd.f32 %v1998, %v2010
    %v2012 = vpop.f32.mrf.mxu0
    %2013 = vdwg.mxu0
    %2014 = vmatpush.bf16.msra.mxu0 %v1438
    %2015 = vmatpush.bf16.msra.mxu0 %v1434
    %2016 = vmatpush.bf16.msra.mxu0 %v1430
    %2017 = vmatpush.bf16.msra.mxu0 %v1426
    %2018 = vmatpush.bf16.msra.mxu0 %v1422
    %2019 = vmatpush.bf16.msra.mxu0 %v1418
    %2020 = vmatpush.bf16.msra.mxu0 %v1414
    %2021 = vmatpush.bf16.msra.mxu0 %v1410
    %2022 = vmatmul.bf16.gmra.mxu0 %v180
    %v2023 = vpop.f32.mrf.mxu0
    %v2024 = vadd.f32 %v2011, %v2023
    %v2025 = vpop.f32.mrf.mxu0
    %2026 = vdwg.mxu0
    %2027 = vmatpush.bf16.msra.mxu0 %v1470
    %2028 = vmatpush.bf16.msra.mxu0 %v1466
    %2029 = vmatpush.bf16.msra.mxu0 %v1462
    %2030 = vmatpush.bf16.msra.mxu0 %v1458
    %2031 = vmatpush.bf16.msra.mxu0 %v1454
    %2032 = vmatpush.bf16.msra.mxu0 %v1450
    %2033 = vmatpush.bf16.msra.mxu0 %v1446
    %2034 = vmatpush.bf16.msra.mxu0 %v1442
    %2035 = vmatmul.bf16.gmra.mxu0 %v181
    %v2036 = vpop.f32.mrf.mxu0
    %v2037 = vadd.f32 %v2024, %v2036
    %v2038 = vpop.f32.mrf.mxu0
    %2039 = vdwg.mxu0
    %2040 = vmatpush.bf16.msra.mxu0 %v1247
    %2041 = vmatpush.bf16.msra.mxu0 %v1243
    %2042 = vmatpush.bf16.msra.mxu0 %v1239
    %2043 = vmatpush.bf16.msra.mxu0 %v1235
    %2044 = vmatpush.bf16.msra.mxu0 %v1231
    %2045 = vmatpush.bf16.msra.mxu0 %v1227
    %2046 = vmatpush.bf16.msra.mxu0 %v1223
    %2047 = vmatpush.bf16.msra.mxu0 %v1219
    %2048 = vmatmul.bf16.gmra.mxu0 %v174
    %v2049 = vpop.f32.mrf.mxu0
    %v2050 = vadd.f32 %v443, %v2049
    %v2051 = vpop.f32.mrf.mxu0
    %2052 = vdwg.mxu0
    %2053 = vmatpush.bf16.msra.mxu0 %v1279
    %2054 = vmatpush.bf16.msra.mxu0 %v1275
    %2055 = vmatpush.bf16.msra.mxu0 %v1271
    %2056 = vmatpush.bf16.msra.mxu0 %v1267
    %2057 = vmatpush.bf16.msra.mxu0 %v1263
    %2058 = vmatpush.bf16.msra.mxu0 %v1259
    %2059 = vmatpush.bf16.msra.mxu0 %v1255
    %2060 = vmatpush.bf16.msra.mxu0 %v1251
    %2061 = vmatmul.bf16.gmra.mxu0 %v175
    %v2062 = vpop.f32.mrf.mxu0
    %v2063 = vadd.f32 %v2050, %v2062
    %v2064 = vpop.f32.mrf.mxu0
    %2065 = vdwg.mxu0
    %2066 = vmatpush.bf16.msra.mxu0 %v1311
    %2067 = vmatpush.bf16.msra.mxu0 %v1307
    %2068 = vmatpush.bf16.msra.mxu0 %v1303
    %2069 = vmatpush.bf16.msra.mxu0 %v1299
    %2070 = vmatpush.bf16.msra.mxu0 %v1295
    %2071 = vmatpush.bf16.msra.mxu0 %v1291
    %2072 = vmatpush.bf16.msra.mxu0 %v1287
    %2073 = vmatpush.bf16.msra.mxu0 %v1283
    %2074 = vmatmul.bf16.gmra.mxu0 %v176
    %v2075 = vpop.f32.mrf.mxu0
    %v2076 = vadd.f32 %v2063, %v2075
    %v2077 = vpop.f32.mrf.mxu0
    %2078 = vdwg.mxu0
    %2079 = vmatpush.bf16.msra.mxu0 %v1343
    %2080 = vmatpush.bf16.msra.mxu0 %v1339
    %2081 = vmatpush.bf16.msra.mxu0 %v1335
    %2082 = vmatpush.bf16.msra.mxu0 %v1331
    %2083 = vmatpush.bf16.msra.mxu0 %v1327
    %2084 = vmatpush.bf16.msra.mxu0 %v1323
    %2085 = vmatpush.bf16.msra.mxu0 %v1319
    %2086 = vmatpush.bf16.msra.mxu0 %v1315
    %2087 = vmatmul.bf16.gmra.mxu0 %v177
    %v2088 = vpop.f32.mrf.mxu0
    %v2089 = vadd.f32 %v2076, %v2088
    %v2090 = vpop.f32.mrf.mxu0
    %2091 = vdwg.mxu0
    %2092 = vmatpush.bf16.msra.mxu0 %v1375
    %2093 = vmatpush.bf16.msra.mxu0 %v1371
    %2094 = vmatpush.bf16.msra.mxu0 %v1367
    %2095 = vmatpush.bf16.msra.mxu0 %v1363
    %2096 = vmatpush.bf16.msra.mxu0 %v1359
    %2097 = vmatpush.bf16.msra.mxu0 %v1355
    %2098 = vmatpush.bf16.msra.mxu0 %v1351
    %2099 = vmatpush.bf16.msra.mxu0 %v1347
    %2100 = vmatmul.bf16.gmra.mxu0 %v178
    %v2101 = vpop.f32.mrf.mxu0
    %v2102 = vadd.f32 %v2089, %v2101
    %v2103 = vpop.f32.mrf.mxu0
    %2104 = vdwg.mxu0
    %2105 = vmatpush.bf16.msra.mxu0 %v1407
    %2106 = vmatpush.bf16.msra.mxu0 %v1403
    %2107 = vmatpush.bf16.msra.mxu0 %v1399
    %2108 = vmatpush.bf16.msra.mxu0 %v1395
    %2109 = vmatpush.bf16.msra.mxu0 %v1391
    %2110 = vmatpush.bf16.msra.mxu0 %v1387
    %2111 = vmatpush.bf16.msra.mxu0 %v1383
    %2112 = vmatpush.bf16.msra.mxu0 %v1379
    %2113 = vmatmul.bf16.gmra.mxu0 %v179
    %v2114 = vpop.f32.mrf.mxu0
    %v2115 = vadd.f32 %v2102, %v2114
    %v2116 = vpop.f32.mrf.mxu0
    %2117 = vdwg.mxu0
    %2118 = vmatpush.bf16.msra.mxu0 %v1439
    %2119 = vmatpush.bf16.msra.mxu0 %v1435
    %2120 = vmatpush.bf16.msra.mxu0 %v1431
    %2121 = vmatpush.bf16.msra.mxu0 %v1427
    %2122 = vmatpush.bf16.msra.mxu0 %v1423
    %2123 = vmatpush.bf16.msra.mxu0 %v1419
    %2124 = vmatpush.bf16.msra.mxu0 %v1415
    %2125 = vmatpush.bf16.msra.mxu0 %v1411
    %2126 = vmatmul.bf16.gmra.mxu0 %v180
    %v2127 = vpop.f32.mrf.mxu0
    %v2128 = vadd.f32 %v2115, %v2127
    %v2129 = vpop.f32.mrf.mxu0
    %2130 = vdwg.mxu0
    %2131 = vmatpush.bf16.msra.mxu0 %v1471
    %2132 = vmatpush.bf16.msra.mxu0 %v1467
    %2133 = vmatpush.bf16.msra.mxu0 %v1463
    %2134 = vmatpush.bf16.msra.mxu0 %v1459
    %2135 = vmatpush.bf16.msra.mxu0 %v1455
    %2136 = vmatpush.bf16.msra.mxu0 %v1451
    %2137 = vmatpush.bf16.msra.mxu0 %v1447
    %2138 = vmatpush.bf16.msra.mxu0 %v1443
    %2139 = vmatmul.bf16.gmra.mxu0 %v181
    %v2140 = vpop.f32.mrf.mxu0
    %v2141 = vadd.f32 %v2128, %v2140
    %v2142 = vpop.f32.mrf.mxu0
    %2143 = vdwg.mxu0
    %v2144 = vmax.f32 %v1829, 0.0
    %v2145 = vmax.f32 %v1933, 0.0
    %v2146 = vmax.f32 %v2037, 0.0
    %v2147 = vmax.f32 %v2141, 0.0
    %v2148 = vpack.c.bf16 %v2144, %v2144
    %v2149 = vpack.c.bf16 %v2145, %v2145
    %v2150 = vpack.c.bf16 %v2146, %v2146
    %v2151 = vpack.c.bf16 %v2147, %v2147
    %v2152 = vld [vmem:[#allocation8] sm:$0xff]
    %v2153 = vld [vmem:[#allocation8 + $0x8] sm:$0xff]
    %v2154 = vld [vmem:[#allocation8 + $0x10] sm:$0xff]
    %v2155 = vld [vmem:[#allocation8 + $0x18] sm:$0xff]
    %v2156 = vld [vmem:[#allocation8 + $0x20] sm:$0xff]
    %v2157 = vld [vmem:[#allocation8 + $0x28] sm:$0xff]
    %v2158 = vld [vmem:[#allocation8 + $0x30] sm:$0xff]
    %v2159 = vld [vmem:[#allocation8 + $0x38] sm:$0xff]
    %v2160 = vld [vmem:[#allocation8 + $0x40] sm:$0xff]
    %v2161 = vld [vmem:[#allocation8 + $0x48] sm:$0xff]
    %v2162 = vld [vmem:[#allocation8 + $0x50] sm:$0xff]
    %v2163 = vld [vmem:[#allocation8 + $0x58] sm:$0xff]
    %v2164 = vld [vmem:[#allocation8 + $0x60] sm:$0xff]
    %v2165 = vld [vmem:[#allocation8 + $0x68] sm:$0xff]
    %v2166 = vld [vmem:[#allocation8 + $0x70] sm:$0xff]
    %v2167 = vld [vmem:[#allocation8 + $0x78] sm:$0xff]
    %v2168 = vld [vmem:[#allocation8 + $0x80] sm:$0xff]
    %v2169 = vld [vmem:[#allocation8 + $0x88] sm:$0xff]
    %v2170 = vld [vmem:[#allocation8 + $0x90] sm:$0xff]
    %v2171 = vld [vmem:[#allocation8 + $0x98] sm:$0xff]
    %v2172 = vld [vmem:[#allocation8 + $0xa0] sm:$0xff]
    %v2173 = vld [vmem:[#allocation8 + $0xa8] sm:$0xff]
    %v2174 = vld [vmem:[#allocation8 + $0xb0] sm:$0xff]
    %v2175 = vld [vmem:[#allocation8 + $0xb8] sm:$0xff]
    %v2176 = vld [vmem:[#allocation8 + $0xc0] sm:$0xff]
    %v2177 = vld [vmem:[#allocation8 + $0xc8] sm:$0xff]
    %v2178 = vld [vmem:[#allocation8 + $0xd0] sm:$0xff]
    %v2179 = vld [vmem:[#allocation8 + $0xd8] sm:$0xff]
    %v2180 = vld [vmem:[#allocation8 + $0xe0] sm:$0xff]
    %v2181 = vld [vmem:[#allocation8 + $0xe8] sm:$0xff]
    %v2182 = vld [vmem:[#allocation8 + $0xf0] sm:$0xff]
    %v2183 = vld [vmem:[#allocation8 + $0xf8] sm:$0xff]
    %v2184 = vld [vmem:[#allocation8 + $0x100] sm:$0xff]
    %v2185 = vld [vmem:[#allocation8 + $0x108] sm:$0xff]
    %v2186 = vld [vmem:[#allocation8 + $0x110] sm:$0xff]
    %v2187 = vld [vmem:[#allocation8 + $0x118] sm:$0xff]
    %v2188 = vld [vmem:[#allocation8 + $0x120] sm:$0xff]
    %v2189 = vld [vmem:[#allocation8 + $0x128] sm:$0xff]
    %v2190 = vld [vmem:[#allocation8 + $0x130] sm:$0xff]
    %v2191 = vld [vmem:[#allocation8 + $0x138] sm:$0xff]
    %v2192 = vld [vmem:[#allocation8 + $0x140] sm:$0xff]
    %v2193 = vld [vmem:[#allocation8 + $0x148] sm:$0xff]
    %v2194 = vld [vmem:[#allocation8 + $0x150] sm:$0xff]
    %v2195 = vld [vmem:[#allocation8 + $0x158] sm:$0xff]
    %v2196 = vld [vmem:[#allocation8 + $0x160] sm:$0xff]
    %v2197 = vld [vmem:[#allocation8 + $0x168] sm:$0xff]
    %v2198 = vld [vmem:[#allocation8 + $0x170] sm:$0xff]
    %v2199 = vld [vmem:[#allocation8 + $0x178] sm:$0xff]
    %v2200 = vld [vmem:[#allocation8 + $0x180] sm:$0xff]
    %v2201 = vld [vmem:[#allocation8 + $0x188] sm:$0xff]
    %v2202 = vld [vmem:[#allocation8 + $0x190] sm:$0xff]
    %v2203 = vld [vmem:[#allocation8 + $0x198] sm:$0xff]
    %v2204 = vld [vmem:[#allocation8 + $0x1a0] sm:$0xff]
    %v2205 = vld [vmem:[#allocation8 + $0x1a8] sm:$0xff]
    %v2206 = vld [vmem:[#allocation8 + $0x1b0] sm:$0xff]
    %v2207 = vld [vmem:[#allocation8 + $0x1b8] sm:$0xff]
    %v2208 = vld [vmem:[#allocation8 + $0x1c0] sm:$0xff]
    %v2209 = vld [vmem:[#allocation8 + $0x1c8] sm:$0xff]
    %v2210 = vld [vmem:[#allocation8 + $0x1d0] sm:$0xff]
    %v2211 = vld [vmem:[#allocation8 + $0x1d8] sm:$0xff]
    %v2212 = vld [vmem:[#allocation8 + $0x1e0] sm:$0xff]
    %v2213 = vld [vmem:[#allocation8 + $0x1e8] sm:$0xff]
    %v2214 = vld [vmem:[#allocation8 + $0x1f0] sm:$0xff]
    %v2215 = vld [vmem:[#allocation8 + $0x1f8] sm:$0xff]
    %v2216 = vld [vmem:[%s4] sm:$0x3]
    %v2218 = vperm.slane %v2216, 0
    %v2219 = vperm.slane %v2216, 1
    %v2286 = vunpack.c.l.b16 %v2152
    %v2287 = vunpack.c.h.b16 %v2152
    %v2288 = vunpack.c.l.b16 %v2153
    %v2289 = vunpack.c.h.b16 %v2153
    %v2290 = vunpack.c.l.b16 %v2154
    %v2291 = vunpack.c.h.b16 %v2154
    %v2292 = vunpack.c.l.b16 %v2155
    %v2293 = vunpack.c.h.b16 %v2155
    %v2294 = vunpack.c.l.b16 %v2156
    %v2295 = vunpack.c.h.b16 %v2156
    %v2296 = vunpack.c.l.b16 %v2157
    %v2297 = vunpack.c.h.b16 %v2157
    %v2298 = vunpack.c.l.b16 %v2158
    %v2299 = vunpack.c.h.b16 %v2158
    %v2300 = vunpack.c.l.b16 %v2159
    %v2301 = vunpack.c.h.b16 %v2159
    %v2302 = vunpack.c.l.b16 %v2160
    %v2303 = vunpack.c.h.b16 %v2160
    %v2304 = vunpack.c.l.b16 %v2161
    %v2305 = vunpack.c.h.b16 %v2161
    %v2306 = vunpack.c.l.b16 %v2162
    %v2307 = vunpack.c.h.b16 %v2162
    %v2308 = vunpack.c.l.b16 %v2163
    %v2309 = vunpack.c.h.b16 %v2163
    %v2310 = vunpack.c.l.b16 %v2164
    %v2311 = vunpack.c.h.b16 %v2164
    %v2312 = vunpack.c.l.b16 %v2165
    %v2313 = vunpack.c.h.b16 %v2165
    %v2314 = vunpack.c.l.b16 %v2166
    %v2315 = vunpack.c.h.b16 %v2166
    %v2316 = vunpack.c.l.b16 %v2167
    %v2317 = vunpack.c.h.b16 %v2167
    %v2318 = vunpack.c.l.b16 %v2168
    %v2319 = vunpack.c.h.b16 %v2168
    %v2320 = vunpack.c.l.b16 %v2169
    %v2321 = vunpack.c.h.b16 %v2169
    %v2322 = vunpack.c.l.b16 %v2170
    %v2323 = vunpack.c.h.b16 %v2170
    %v2324 = vunpack.c.l.b16 %v2171
    %v2325 = vunpack.c.h.b16 %v2171
    %v2326 = vunpack.c.l.b16 %v2172
    %v2327 = vunpack.c.h.b16 %v2172
    %v2328 = vunpack.c.l.b16 %v2173
    %v2329 = vunpack.c.h.b16 %v2173
    %v2330 = vunpack.c.l.b16 %v2174
    %v2331 = vunpack.c.h.b16 %v2174
    %v2332 = vunpack.c.l.b16 %v2175
    %v2333 = vunpack.c.h.b16 %v2175
    %v2334 = vunpack.c.l.b16 %v2176
    %v2335 = vunpack.c.h.b16 %v2176
    %v2336 = vunpack.c.l.b16 %v2177
    %v2337 = vunpack.c.h.b16 %v2177
    %v2338 = vunpack.c.l.b16 %v2178
    %v2339 = vunpack.c.h.b16 %v2178
    %v2340 = vunpack.c.l.b16 %v2179
    %v2341 = vunpack.c.h.b16 %v2179
    %v2342 = vunpack.c.l.b16 %v2180
    %v2343 = vunpack.c.h.b16 %v2180
    %v2344 = vunpack.c.l.b16 %v2181
    %v2345 = vunpack.c.h.b16 %v2181
    %v2346 = vunpack.c.l.b16 %v2182
    %v2347 = vunpack.c.h.b16 %v2182
    %v2348 = vunpack.c.l.b16 %v2183
    %v2349 = vunpack.c.h.b16 %v2183
    %v2350 = vunpack.c.l.b16 %v2184
    %v2351 = vunpack.c.h.b16 %v2184
    %v2352 = vunpack.c.l.b16 %v2185
    %v2353 = vunpack.c.h.b16 %v2185
    %v2354 = vunpack.c.l.b16 %v2186
    %v2355 = vunpack.c.h.b16 %v2186
    %v2356 = vunpack.c.l.b16 %v2187
    %v2357 = vunpack.c.h.b16 %v2187
    %v2358 = vunpack.c.l.b16 %v2188
    %v2359 = vunpack.c.h.b16 %v2188
    %v2360 = vunpack.c.l.b16 %v2189
    %v2361 = vunpack.c.h.b16 %v2189
    %v2362 = vunpack.c.l.b16 %v2190
    %v2363 = vunpack.c.h.b16 %v2190
    %v2364 = vunpack.c.l.b16 %v2191
    %v2365 = vunpack.c.h.b16 %v2191
    %v2366 = vunpack.c.l.b16 %v2192
    %v2367 = vunpack.c.h.b16 %v2192
    %v2368 = vunpack.c.l.b16 %v2193
    %v2369 = vunpack.c.h.b16 %v2193
    %v2370 = vunpack.c.l.b16 %v2194
    %v2371 = vunpack.c.h.b16 %v2194
    %v2372 = vunpack.c.l.b16 %v2195
    %v2373 = vunpack.c.h.b16 %v2195
    %v2374 = vunpack.c.l.b16 %v2196
    %v2375 = vunpack.c.h.b16 %v2196
    %v2376 = vunpack.c.l.b16 %v2197
    %v2377 = vunpack.c.h.b16 %v2197
    %v2378 = vunpack.c.l.b16 %v2198
    %v2379 = vunpack.c.h.b16 %v2198
    %v2380 = vunpack.c.l.b16 %v2199
    %v2381 = vunpack.c.h.b16 %v2199
    %v2382 = vunpack.c.l.b16 %v2200
    %v2383 = vunpack.c.h.b16 %v2200
    %v2384 = vunpack.c.l.b16 %v2201
    %v2385 = vunpack.c.h.b16 %v2201
    %v2386 = vunpack.c.l.b16 %v2202
    %v2387 = vunpack.c.h.b16 %v2202
    %v2388 = vunpack.c.l.b16 %v2203
    %v2389 = vunpack.c.h.b16 %v2203
    %v2390 = vunpack.c.l.b16 %v2204
    %v2391 = vunpack.c.h.b16 %v2204
    %v2392 = vunpack.c.l.b16 %v2205
    %v2393 = vunpack.c.h.b16 %v2205
    %v2394 = vunpack.c.l.b16 %v2206
    %v2395 = vunpack.c.h.b16 %v2206
    %v2396 = vunpack.c.l.b16 %v2207
    %v2397 = vunpack.c.h.b16 %v2207
    %v2398 = vunpack.c.l.b16 %v2208
    %v2399 = vunpack.c.h.b16 %v2208
    %v2400 = vunpack.c.l.b16 %v2209
    %v2401 = vunpack.c.h.b16 %v2209
    %v2402 = vunpack.c.l.b16 %v2210
    %v2403 = vunpack.c.h.b16 %v2210
    %v2404 = vunpack.c.l.b16 %v2211
    %v2405 = vunpack.c.h.b16 %v2211
    %v2406 = vunpack.c.l.b16 %v2212
    %v2407 = vunpack.c.h.b16 %v2212
    %v2408 = vunpack.c.l.b16 %v2213
    %v2409 = vunpack.c.h.b16 %v2213
    %v2410 = vunpack.c.l.b16 %v2214
    %v2411 = vunpack.c.h.b16 %v2214
    %v2412 = vunpack.c.l.b16 %v2215
    %v2413 = vunpack.c.h.b16 %v2215
    %v2414 = vpack.c.b16 %v2288, %v2286
    %v2415 = vpack.c.b16 %v2289, %v2287
    %v2416 = vpack.c.b16 %v2292, %v2290
    %v2417 = vpack.c.b16 %v2293, %v2291
    %v2418 = vpack.c.b16 %v2296, %v2294
    %v2419 = vpack.c.b16 %v2297, %v2295
    %v2420 = vpack.c.b16 %v2300, %v2298
    %v2421 = vpack.c.b16 %v2301, %v2299
    %v2422 = vpack.c.b16 %v2304, %v2302
    %v2423 = vpack.c.b16 %v2305, %v2303
    %v2424 = vpack.c.b16 %v2308, %v2306
    %v2425 = vpack.c.b16 %v2309, %v2307
    %v2426 = vpack.c.b16 %v2312, %v2310
    %v2427 = vpack.c.b16 %v2313, %v2311
    %v2428 = vpack.c.b16 %v2316, %v2314
    %v2429 = vpack.c.b16 %v2317, %v2315
    %v2430 = vpack.c.b16 %v2320, %v2318
    %v2431 = vpack.c.b16 %v2321, %v2319
    %v2432 = vpack.c.b16 %v2324, %v2322
    %v2433 = vpack.c.b16 %v2325, %v2323
    %v2434 = vpack.c.b16 %v2328, %v2326
    %v2435 = vpack.c.b16 %v2329, %v2327
    %v2436 = vpack.c.b16 %v2332, %v2330
    %v2437 = vpack.c.b16 %v2333, %v2331
    %v2438 = vpack.c.b16 %v2336, %v2334
    %v2439 = vpack.c.b16 %v2337, %v2335
    %v2440 = vpack.c.b16 %v2340, %v2338
    %v2441 = vpack.c.b16 %v2341, %v2339
    %v2442 = vpack.c.b16 %v2344, %v2342
    %v2443 = vpack.c.b16 %v2345, %v2343
    %v2444 = vpack.c.b16 %v2348, %v2346
    %v2445 = vpack.c.b16 %v2349, %v2347
    %v2446 = vpack.c.b16 %v2352, %v2350
    %v2447 = vpack.c.b16 %v2353, %v2351
    %v2448 = vpack.c.b16 %v2356, %v2354
    %v2449 = vpack.c.b16 %v2357, %v2355
    %v2450 = vpack.c.b16 %v2360, %v2358
    %v2451 = vpack.c.b16 %v2361, %v2359
    %v2452 = vpack.c.b16 %v2364, %v2362
    %v2453 = vpack.c.b16 %v2365, %v2363
    %v2454 = vpack.c.b16 %v2368, %v2366
    %v2455 = vpack.c.b16 %v2369, %v2367
    %v2456 = vpack.c.b16 %v2372, %v2370
    %v2457 = vpack.c.b16 %v2373, %v2371
    %v2458 = vpack.c.b16 %v2376, %v2374
    %v2459 = vpack.c.b16 %v2377, %v2375
    %v2460 = vpack.c.b16 %v2380, %v2378
    %v2461 = vpack.c.b16 %v2381, %v2379
    %v2462 = vpack.c.b16 %v2384, %v2382
    %v2463 = vpack.c.b16 %v2385, %v2383
    %v2464 = vpack.c.b16 %v2388, %v2386
    %v2465 = vpack.c.b16 %v2389, %v2387
    %v2466 = vpack.c.b16 %v2392, %v2390
    %v2467 = vpack.c.b16 %v2393, %v2391
    %v2468 = vpack.c.b16 %v2396, %v2394
    %v2469 = vpack.c.b16 %v2397, %v2395
    %v2470 = vpack.c.b16 %v2400, %v2398
    %v2471 = vpack.c.b16 %v2401, %v2399
    %v2472 = vpack.c.b16 %v2404, %v2402
    %v2473 = vpack.c.b16 %v2405, %v2403
    %v2474 = vpack.c.b16 %v2408, %v2406
    %v2475 = vpack.c.b16 %v2409, %v2407
    %v2476 = vpack.c.b16 %v2412, %v2410
    %v2477 = vpack.c.b16 %v2413, %v2411
    %2542 = vmatpush.bf16.msra.mxu0 %v2428
    %2543 = vmatpush.bf16.msra.mxu0 %v2426
    %2544 = vmatpush.bf16.msra.mxu0 %v2424
    %2545 = vmatpush.bf16.msra.mxu0 %v2422
    %2546 = vmatpush.bf16.msra.mxu0 %v2420
    %2547 = vmatpush.bf16.msra.mxu0 %v2418
    %2548 = vmatpush.bf16.msra.mxu0 %v2416
    %2549 = vmatpush.bf16.msra.mxu0 %v2414
    %2550 = vmatmul.bf16.gmra.mxu0 %v2148
    %v2551 = vpop.f32.mrf.mxu0
    %v2552 = vadd.f32 %v2218, %v2551
    %v2553 = vpop.f32.mrf.mxu0
    %2554 = vdwg.mxu0
    %2555 = vmatpush.bf16.msra.mxu0 %v2444
    %2556 = vmatpush.bf16.msra.mxu0 %v2442
    %2557 = vmatpush.bf16.msra.mxu0 %v2440
    %2558 = vmatpush.bf16.msra.mxu0 %v2438
    %2559 = vmatpush.bf16.msra.mxu0 %v2436
    %2560 = vmatpush.bf16.msra.mxu0 %v2434
    %2561 = vmatpush.bf16.msra.mxu0 %v2432
    %2562 = vmatpush.bf16.msra.mxu0 %v2430
    %2563 = vmatmul.bf16.gmra.mxu0 %v2149
    %v2564 = vpop.f32.mrf.mxu0
    %v2565 = vadd.f32 %v2552, %v2564
    %v2566 = vpop.f32.mrf.mxu0
    %2567 = vdwg.mxu0
    %2568 = vmatpush.bf16.msra.mxu0 %v2460
    %2569 = vmatpush.bf16.msra.mxu0 %v2458
    %2570 = vmatpush.bf16.msra.mxu0 %v2456
    %2571 = vmatpush.bf16.msra.mxu0 %v2454
    %2572 = vmatpush.bf16.msra.mxu0 %v2452
    %2573 = vmatpush.bf16.msra.mxu0 %v2450
    %2574 = vmatpush.bf16.msra.mxu0 %v2448
    %2575 = vmatpush.bf16.msra.mxu0 %v2446
    %2576 = vmatmul.bf16.gmra.mxu0 %v2150
    %v2577 = vpop.f32.mrf.mxu0
    %v2578 = vadd.f32 %v2565, %v2577
    %v2579 = vpop.f32.mrf.mxu0
    %2580 = vdwg.mxu0
    %2581 = vmatpush.bf16.msra.mxu0 %v2476
    %2582 = vmatpush.bf16.msra.mxu0 %v2474
    %2583 = vmatpush.bf16.msra.mxu0 %v2472
    %2584 = vmatpush.bf16.msra.mxu0 %v2470
    %2585 = vmatpush.bf16.msra.mxu0 %v2468
    %2586 = vmatpush.bf16.msra.mxu0 %v2466
    %2587 = vmatpush.bf16.msra.mxu0 %v2464
    %2588 = vmatpush.bf16.msra.mxu0 %v2462
    %2589 = vmatmul.bf16.gmra.mxu0 %v2151
    %v2590 = vpop.f32.mrf.mxu0
    %v2591 = vadd.f32 %v2578, %v2590
    %v2592 = vpop.f32.mrf.mxu0
    %2593 = vdwg.mxu0
    %2594 = vmatpush.bf16.msra.mxu0 %v2429
    %2595 = vmatpush.bf16.msra.mxu0 %v2427
    %2596 = vmatpush.bf16.msra.mxu0 %v2425
    %2597 = vmatpush.bf16.msra.mxu0 %v2423
    %2598 = vmatpush.bf16.msra.mxu0 %v2421
    %2599 = vmatpush.bf16.msra.mxu0 %v2419
    %2600 = vmatpush.bf16.msra.mxu0 %v2417
    %2601 = vmatpush.bf16.msra.mxu0 %v2415
    %2602 = vmatmul.bf16.gmra.mxu0 %v2148
    %v2603 = vpop.f32.mrf.mxu0
    %v2604 = vadd.f32 %v2219, %v2603
    %v2605 = vpop.f32.mrf.mxu0
    %2606 = vdwg.mxu0
    %2607 = vmatpush.bf16.msra.mxu0 %v2445
    %2608 = vmatpush.bf16.msra.mxu0 %v2443
    %2609 = vmatpush.bf16.msra.mxu0 %v2441
    %2610 = vmatpush.bf16.msra.mxu0 %v2439
    %2611 = vmatpush.bf16.msra.mxu0 %v2437
    %2612 = vmatpush.bf16.msra.mxu0 %v2435
    %2613 = vmatpush.bf16.msra.mxu0 %v2433
    %2614 = vmatpush.bf16.msra.mxu0 %v2431
    %2615 = vmatmul.bf16.gmra.mxu0 %v2149
    %v2616 = vpop.f32.mrf.mxu0
    %v2617 = vadd.f32 %v2604, %v2616
    %v2618 = vpop.f32.mrf.mxu0
    %2619 = vdwg.mxu0
    %2620 = vmatpush.bf16.msra.mxu0 %v2461
    %2621 = vmatpush.bf16.msra.mxu0 %v2459
    %2622 = vmatpush.bf16.msra.mxu0 %v2457
    %2623 = vmatpush.bf16.msra.mxu0 %v2455
    %2624 = vmatpush.bf16.msra.mxu0 %v2453
    %2625 = vmatpush.bf16.msra.mxu0 %v2451
    %2626 = vmatpush.bf16.msra.mxu0 %v2449
    %2627 = vmatpush.bf16.msra.mxu0 %v2447
    %2628 = vmatmul.bf16.gmra.mxu0 %v2150
    %v2629 = vpop.f32.mrf.mxu0
    %v2630 = vadd.f32 %v2617, %v2629
    %v2631 = vpop.f32.mrf.mxu0
    %2632 = vdwg.mxu0
    %2633 = vmatpush.bf16.msra.mxu0 %v2477
    %2634 = vmatpush.bf16.msra.mxu0 %v2475
    %2635 = vmatpush.bf16.msra.mxu0 %v2473
    %2636 = vmatpush.bf16.msra.mxu0 %v2471
    %2637 = vmatpush.bf16.msra.mxu0 %v2469
    %2638 = vmatpush.bf16.msra.mxu0 %v2467
    %2639 = vmatpush.bf16.msra.mxu0 %v2465
    %2640 = vmatpush.bf16.msra.mxu0 %v2463
    %2641 = vmatmul.bf16.gmra.mxu0 %v2151
    %v2642 = vpop.f32.mrf.mxu0
    %v2643 = vadd.f32 %v2630, %v2642
    %v2644 = vpop.f32.mrf.mxu0
    %2645 = vdwg.mxu0
    %v2646 = vmax.f32 %v2591, 0.0
    %v2647 = vmax.f32 %v2643, 0.0
    %v2648 = vpack.c.bf16 %v2646, %v2646
    %v2649 = vpack.c.bf16 %v2647, %v2647
    %v2650 = vld [vmem:[#allocation10] sm:$0xf]
    %v2651 = vld [vmem:[#allocation10 + $0x4] sm:$0xf]
    %v2652 = vld [vmem:[#allocation10 + $0x8] sm:$0xf]
    %v2653 = vld [vmem:[#allocation10 + $0xc] sm:$0xf]
    %v2654 = vld [vmem:[#allocation10 + $0x10] sm:$0xf]
    %v2655 = vld [vmem:[#allocation10 + $0x14] sm:$0xf]
    %v2656 = vld [vmem:[#allocation10 + $0x18] sm:$0xf]
    %v2657 = vld [vmem:[#allocation10 + $0x1c] sm:$0xf]
    %v2658 = vld [vmem:[#allocation10 + $0x20] sm:$0xf]
    %v2659 = vld [vmem:[#allocation10 + $0x24] sm:$0xf]
    %v2660 = vld [vmem:[#allocation10 + $0x28] sm:$0xf]
    %v2661 = vld [vmem:[#allocation10 + $0x2c] sm:$0xf]
    %v2662 = vld [vmem:[#allocation10 + $0x30] sm:$0xf]
    %v2663 = vld [vmem:[#allocation10 + $0x34] sm:$0xf]
    %v2664 = vld [vmem:[#allocation10 + $0x38] sm:$0xf]
    %v2665 = vld [vmem:[#allocation10 + $0x3c] sm:$0xf]
    %v2666 = vld [vmem:[#allocation10 + $0x40] sm:$0xf]
    %v2667 = vld [vmem:[#allocation10 + $0x44] sm:$0xf]
    %v2668 = vld [vmem:[#allocation10 + $0x48] sm:$0xf]
    %v2669 = vld [vmem:[#allocation10 + $0x4c] sm:$0xf]
    %v2670 = vld [vmem:[#allocation10 + $0x50] sm:$0xf]
    %v2671 = vld [vmem:[#allocation10 + $0x54] sm:$0xf]
    %v2672 = vld [vmem:[#allocation10 + $0x58] sm:$0xf]
    %v2673 = vld [vmem:[#allocation10 + $0x5c] sm:$0xf]
    %v2674 = vld [vmem:[#allocation10 + $0x60] sm:$0xf]
    %v2675 = vld [vmem:[#allocation10 + $0x64] sm:$0xf]
    %v2676 = vld [vmem:[#allocation10 + $0x68] sm:$0xf]
    %v2677 = vld [vmem:[#allocation10 + $0x6c] sm:$0xf]
    %v2678 = vld [vmem:[#allocation10 + $0x70] sm:$0xf]
    %v2679 = vld [vmem:[#allocation10 + $0x74] sm:$0xf]
    %v2680 = vld [vmem:[#allocation10 + $0x78] sm:$0xf]
    %v2681 = vld [vmem:[#allocation10 + $0x7c] sm:$0xf]
    %v2682 = vld [vmem:[%s6] sm:$0x1]
    %v2684 = vperm.slane %v2682, 0
    %v2718 = vunpack.c.l.b16 %v2650
    %v2719 = vunpack.c.l.b16 %v2651
    %v2720 = vunpack.c.l.b16 %v2652
    %v2721 = vunpack.c.l.b16 %v2653
    %v2722 = vunpack.c.l.b16 %v2654
    %v2723 = vunpack.c.l.b16 %v2655
    %v2724 = vunpack.c.l.b16 %v2656
    %v2725 = vunpack.c.l.b16 %v2657
    %v2726 = vunpack.c.l.b16 %v2658
    %v2727 = vunpack.c.l.b16 %v2659
    %v2728 = vunpack.c.l.b16 %v2660
    %v2729 = vunpack.c.l.b16 %v2661
    %v2730 = vunpack.c.l.b16 %v2662
    %v2731 = vunpack.c.l.b16 %v2663
    %v2732 = vunpack.c.l.b16 %v2664
    %v2733 = vunpack.c.l.b16 %v2665
    %v2734 = vunpack.c.l.b16 %v2666
    %v2735 = vunpack.c.l.b16 %v2667
    %v2736 = vunpack.c.l.b16 %v2668
    %v2737 = vunpack.c.l.b16 %v2669
    %v2738 = vunpack.c.l.b16 %v2670
    %v2739 = vunpack.c.l.b16 %v2671
    %v2740 = vunpack.c.l.b16 %v2672
    %v2741 = vunpack.c.l.b16 %v2673
    %v2742 = vunpack.c.l.b16 %v2674
    %v2743 = vunpack.c.l.b16 %v2675
    %v2744 = vunpack.c.l.b16 %v2676
    %v2745 = vunpack.c.l.b16 %v2677
    %v2746 = vunpack.c.l.b16 %v2678
    %v2747 = vunpack.c.l.b16 %v2679
    %v2748 = vunpack.c.l.b16 %v2680
    %v2749 = vunpack.c.l.b16 %v2681
    %v2750 = vpack.c.b16 %v2719, %v2718
    %v2751 = vpack.c.b16 %v2721, %v2720
    %v2752 = vpack.c.b16 %v2723, %v2722
    %v2753 = vpack.c.b16 %v2725, %v2724
    %v2754 = vpack.c.b16 %v2727, %v2726
    %v2755 = vpack.c.b16 %v2729, %v2728
    %v2756 = vpack.c.b16 %v2731, %v2730
    %v2757 = vpack.c.b16 %v2733, %v2732
    %v2758 = vpack.c.b16 %v2735, %v2734
    %v2759 = vpack.c.b16 %v2737, %v2736
    %v2760 = vpack.c.b16 %v2739, %v2738
    %v2761 = vpack.c.b16 %v2741, %v2740
    %v2762 = vpack.c.b16 %v2743, %v2742
    %v2763 = vpack.c.b16 %v2745, %v2744
    %v2764 = vpack.c.b16 %v2747, %v2746
    %v2765 = vpack.c.b16 %v2749, %v2748
    %2782 = vmatpush.bf16.msra.mxu0 %v2757
    %2783 = vmatpush.bf16.msra.mxu0 %v2756
    %2784 = vmatpush.bf16.msra.mxu0 %v2755
    %2785 = vmatpush.bf16.msra.mxu0 %v2754
    %2786 = vmatpush.bf16.msra.mxu0 %v2753
    %2787 = vmatpush.bf16.msra.mxu0 %v2752
    %2788 = vmatpush.bf16.msra.mxu0 %v2751
    %2789 = vmatpush.bf16.msra.mxu0 %v2750
    %2790 = vmatmul.bf16.gmra.mxu0 %v2648
    %v2791 = vpop.f32.mrf.mxu0
    %v2792 = vadd.f32 %v2684, %v2791
    %v2793 = vpop.f32.mrf.mxu0
    %2794 = vdwg.mxu0
    %2795 = vmatpush.bf16.msra.mxu0 %v2765
    %2796 = vmatpush.bf16.msra.mxu0 %v2764
    %2797 = vmatpush.bf16.msra.mxu0 %v2763
    %2798 = vmatpush.bf16.msra.mxu0 %v2762
    %2799 = vmatpush.bf16.msra.mxu0 %v2761
    %2800 = vmatpush.bf16.msra.mxu0 %v2760
    %2801 = vmatpush.bf16.msra.mxu0 %v2759
    %2802 = vmatpush.bf16.msra.mxu0 %v2758
    %2803 = vmatmul.bf16.gmra.mxu0 %v2649
    %v2804 = vpop.f32.mrf.mxu0
    %v2805 = vadd.f32 %v2792, %v2804
    %v2806 = vpop.f32.mrf.mxu0
    %2807 = vdwg.mxu0
    %v2808 = vmax.f32 %v2805, 0.0
    %v2809 = vpack.c.bf16 %v2808, %v2808
    %v2810 = vld [vmem:[#allocation11] sm:$0xf]
    %v2811 = vld [vmem:[#allocation11 + $0x4] sm:$0xf]
    %v2812 = vld [vmem:[#allocation11 + $0x8] sm:$0xf]
    %v2813 = vld [vmem:[#allocation11 + $0xc] sm:$0xf]
    %v2814 = vld [vmem:[#allocation11 + $0x10] sm:$0xf]
    %v2815 = vld [vmem:[#allocation11 + $0x14] sm:$0xf]
    %v2816 = vld [vmem:[#allocation11 + $0x18] sm:$0xf]
    %v2817 = vld [vmem:[#allocation11 + $0x1c] sm:$0xf]
    %v2818 = vld [vmem:[#allocation11 + $0x20] sm:$0xf]
    %v2819 = vld [vmem:[#allocation11 + $0x24] sm:$0xf]
    %v2820 = vld [vmem:[#allocation11 + $0x28] sm:$0xf]
    %v2821 = vld [vmem:[#allocation11 + $0x2c] sm:$0xf]
    %v2822 = vld [vmem:[#allocation11 + $0x30] sm:$0xf]
    %v2823 = vld [vmem:[#allocation11 + $0x34] sm:$0xf]
    %v2824 = vld [vmem:[#allocation11 + $0x38] sm:$0xf]
    %v2825 = vld [vmem:[#allocation11 + $0x3c] sm:$0xf]
    %v2826 = vld [vmem:[%s8] sm:$0x1]
    %v2828 = vperm.slane %v2826, 0
    %v2846 = vunpack.c.l.b16 %v2810
    %v2847 = vunpack.c.l.b16 %v2811
    %v2848 = vunpack.c.l.b16 %v2812
    %v2849 = vunpack.c.l.b16 %v2813
    %v2850 = vunpack.c.l.b16 %v2814
    %v2851 = vunpack.c.l.b16 %v2815
    %v2852 = vunpack.c.l.b16 %v2816
    %v2853 = vunpack.c.l.b16 %v2817
    %v2854 = vunpack.c.l.b16 %v2818
    %v2855 = vunpack.c.l.b16 %v2819
    %v2856 = vunpack.c.l.b16 %v2820
    %v2857 = vunpack.c.l.b16 %v2821
    %v2858 = vunpack.c.l.b16 %v2822
    %v2859 = vunpack.c.l.b16 %v2823
    %v2860 = vunpack.c.l.b16 %v2824
    %v2861 = vunpack.c.l.b16 %v2825
    %v2862 = vpack.c.b16 %v2847, %v2846
    %v2863 = vpack.c.b16 %v2849, %v2848
    %v2864 = vpack.c.b16 %v2851, %v2850
    %v2865 = vpack.c.b16 %v2853, %v2852
    %v2866 = vpack.c.b16 %v2855, %v2854
    %v2867 = vpack.c.b16 %v2857, %v2856
    %v2868 = vpack.c.b16 %v2859, %v2858
    %v2869 = vpack.c.b16 %v2861, %v2860
    %2878 = vmatpush.bf16.msra.mxu0 %v2869
    %2879 = vmatpush.bf16.msra.mxu0 %v2868
    %2880 = vmatpush.bf16.msra.mxu0 %v2867
    %2881 = vmatpush.bf16.msra.mxu0 %v2866
    %2882 = vmatpush.bf16.msra.mxu0 %v2865
    %2883 = vmatpush.bf16.msra.mxu0 %v2864
    %2884 = vmatpush.bf16.msra.mxu0 %v2863
    %2885 = vmatpush.bf16.msra.mxu0 %v2862
    %2886 = vmatmul.bf16.gmra.mxu0 %v2809
    %v2887 = vpop.f32.mrf.mxu0
    %v2888 = vadd.f32 %v2828, %v2887
    %v2889 = vpop.f32.mrf.mxu0
    %2890 = vdwg.mxu0
    %v2891 = vmax.f32 %v2888, 0.0
    %v2892 = vpack.c.bf16 %v2891, %v2891
    %v2893 = vld [vmem:[#allocation13] sm:$0xf]
    %v2894 = vld [vmem:[#allocation13 + $0x4] sm:$0xf]
    %v2895 = vld [vmem:[#allocation13 + $0x8] sm:$0xf]
    %v2896 = vld [vmem:[#allocation13 + $0xc] sm:$0xf]
    %v2897 = vld [vmem:[#allocation13 + $0x10] sm:$0xf]
    %v2898 = vld [vmem:[#allocation13 + $0x14] sm:$0xf]
    %v2899 = vld [vmem:[#allocation13 + $0x18] sm:$0xf]
    %v2900 = vld [vmem:[#allocation13 + $0x1c] sm:$0xf]
    %v2901 = vld [vmem:[#allocation13 + $0x20] sm:$0xf]
    %v2902 = vld [vmem:[#allocation13 + $0x24] sm:$0xf]
    %v2903 = vld [vmem:[#allocation13 + $0x28] sm:$0xf]
    %v2904 = vld [vmem:[#allocation13 + $0x2c] sm:$0xf]
    %v2905 = vld [vmem:[#allocation13 + $0x30] sm:$0xf]
    %v2906 = vld [vmem:[#allocation13 + $0x34] sm:$0xf]
    %v2907 = vld [vmem:[#allocation13 + $0x38] sm:$0xf]
    %v2908 = vld [vmem:[#allocation13 + $0x3c] sm:$0xf]
    %v2909 = vld [vmem:[%s10] sm:$0x1]
    %v2911 = vperm.slane %v2909, 0
    %v2929 = vunpack.c.l.b16 %v2893
    %v2930 = vunpack.c.l.b16 %v2894
    %v2931 = vunpack.c.l.b16 %v2895
    %v2932 = vunpack.c.l.b16 %v2896
    %v2933 = vunpack.c.l.b16 %v2897
    %v2934 = vunpack.c.l.b16 %v2898
    %v2935 = vunpack.c.l.b16 %v2899
    %v2936 = vunpack.c.l.b16 %v2900
    %v2937 = vunpack.c.l.b16 %v2901
    %v2938 = vunpack.c.l.b16 %v2902
    %v2939 = vunpack.c.l.b16 %v2903
    %v2940 = vunpack.c.l.b16 %v2904
    %v2941 = vunpack.c.l.b16 %v2905
    %v2942 = vunpack.c.l.b16 %v2906
    %v2943 = vunpack.c.l.b16 %v2907
    %v2944 = vunpack.c.l.b16 %v2908
    %v2945 = vpack.c.b16 %v2930, %v2929
    %v2946 = vpack.c.b16 %v2932, %v2931
    %v2947 = vpack.c.b16 %v2934, %v2933
    %v2948 = vpack.c.b16 %v2936, %v2935
    %v2949 = vpack.c.b16 %v2938, %v2937
    %v2950 = vpack.c.b16 %v2940, %v2939
    %v2951 = vpack.c.b16 %v2942, %v2941
    %v2952 = vpack.c.b16 %v2944, %v2943
    %2961 = vmatpush.bf16.msra.mxu0 %v2952
    %2962 = vmatpush.bf16.msra.mxu0 %v2951
    %2963 = vmatpush.bf16.msra.mxu0 %v2950
    %2964 = vmatpush.bf16.msra.mxu0 %v2949
    %2965 = vmatpush.bf16.msra.mxu0 %v2948
    %2966 = vmatpush.bf16.msra.mxu0 %v2947
    %2967 = vmatpush.bf16.msra.mxu0 %v2946
    %2968 = vmatpush.bf16.msra.mxu0 %v2945
    %2969 = vmatmul.bf16.gmra.mxu0 %v2892
    %v2970 = vpop.f32.mrf.mxu0
    %v2971 = vadd.f32 %v2911, %v2970
    %v2972 = vpop.f32.mrf.mxu0
    %2973 = vdwg.mxu0
    %v2974 = vmax.f32 %v2971, 0.0
    %v2975 = vpack.c.bf16 %v2974, %v2974
    %v2976 = vld [vmem:[#allocation14] sm:$0xf]
    %v2977 = vld [vmem:[#allocation14 + $0x4] sm:$0xf]
    %v2978 = vld [vmem:[#allocation14 + $0x8] sm:$0xf]
    %v2979 = vld [vmem:[#allocation14 + $0xc] sm:$0xf]
    %v2980 = vld [vmem:[#allocation14 + $0x10] sm:$0xf]
    %v2981 = vld [vmem:[#allocation14 + $0x14] sm:$0xf]
    %v2982 = vld [vmem:[#allocation14 + $0x18] sm:$0xf]
    %v2983 = vld [vmem:[#allocation14 + $0x1c] sm:$0xf]
    %v2984 = vld [vmem:[#allocation14 + $0x20] sm:$0xf]
    %v2985 = vld [vmem:[#allocation14 + $0x24] sm:$0xf]
    %v2986 = vld [vmem:[#allocation14 + $0x28] sm:$0xf]
    %v2987 = vld [vmem:[#allocation14 + $0x2c] sm:$0xf]
    %v2988 = vld [vmem:[#allocation14 + $0x30] sm:$0xf]
    %v2989 = vld [vmem:[#allocation14 + $0x34] sm:$0xf]
    %v2990 = vld [vmem:[#allocation14 + $0x38] sm:$0xf]
    %v2991 = vld [vmem:[#allocation14 + $0x3c] sm:$0xf]
    %v2992 = vld [vmem:[%s12] sm:$0x1]
    %v2994 = vperm.slane %v2992, 0
    %v3012 = vunpack.c.l.b16 %v2976
    %v3013 = vunpack.c.l.b16 %v2977
    %v3014 = vunpack.c.l.b16 %v2978
    %v3015 = vunpack.c.l.b16 %v2979
    %v3016 = vunpack.c.l.b16 %v2980
    %v3017 = vunpack.c.l.b16 %v2981
    %v3018 = vunpack.c.l.b16 %v2982
    %v3019 = vunpack.c.l.b16 %v2983
    %v3020 = vunpack.c.l.b16 %v2984
    %v3021 = vunpack.c.l.b16 %v2985
    %v3022 = vunpack.c.l.b16 %v2986
    %v3023 = vunpack.c.l.b16 %v2987
    %v3024 = vunpack.c.l.b16 %v2988
    %v3025 = vunpack.c.l.b16 %v2989
    %v3026 = vunpack.c.l.b16 %v2990
    %v3027 = vunpack.c.l.b16 %v2991
    %v3028 = vpack.c.b16 %v3013, %v3012
    %v3029 = vpack.c.b16 %v3015, %v3014
    %v3030 = vpack.c.b16 %v3017, %v3016
    %v3031 = vpack.c.b16 %v3019, %v3018
    %v3032 = vpack.c.b16 %v3021, %v3020
    %v3033 = vpack.c.b16 %v3023, %v3022
    %v3034 = vpack.c.b16 %v3025, %v3024
    %v3035 = vpack.c.b16 %v3027, %v3026
    %3044 = vmatpush.bf16.msra.mxu0 %v3035
    %3045 = vmatpush.bf16.msra.mxu0 %v3034
    %3046 = vmatpush.bf16.msra.mxu0 %v3033
    %3047 = vmatpush.bf16.msra.mxu0 %v3032
    %3048 = vmatpush.bf16.msra.mxu0 %v3031
    %3049 = vmatpush.bf16.msra.mxu0 %v3030
    %3050 = vmatpush.bf16.msra.mxu0 %v3029
    %3051 = vmatpush.bf16.msra.mxu0 %v3028
    %3052 = vmatmul.bf16.gmra.mxu0 %v2975
    %v3053 = vpop.f32.mrf.mxu0
    %v3054 = vadd.f32 %v2994, %v3053
    %v3055 = vpop.f32.mrf.mxu0
    %3056 = vdwg.mxu0
    %v3057 = vpack.c.bf16 %v3054, %v3054
    %3058 = vst [vmem:[#allocation16] sm:$0xf] %v3057
    // Predicated region
    $region86: #{tpu_custom_call.1} parent=1 // pred_check
      _
    $region87: #{tpu_custom_call.1} parent=1 // pred_check_branch
      %3060 = sbr.rel (0) target = $region89
    $region88: #{tpu_custom_call.1} parent=1 // pred_region
      %3062 = vsyncadd [#allocation4], 0
      %s3064 = sshll.u32 [#allocation16], 4
      %s3065 = int_to_ptr.vmem [resolvable:$true] %s3064
      %s3066 = sshll.u32 %s13, 4
      %s3067 = int_to_ptr.hbm [resolvable:$true] %s3066
      %3069 = dma.vmem_to_hbm [thread:$0]  %s3065, 64, %s3067, [#allocation4]
    $region89: #{tpu_custom_call.1} parent=1 // pred_fallthru
      _
    // Predicated region
    $region90: #{tpu_custom_call.1} parent=1 // pred_check
      _
    $region91: #{tpu_custom_call.1} parent=1 // pred_check_branch
      %3071 = sbr.rel (0) target = $region93
    $region92: #{tpu_custom_call.1} parent=1 // pred_region
      %3073 = dma.done [#allocation4], 64
    $region93: #{tpu_custom_call.1} parent=1 // pred_fallthru
      _
    %3074 = vsyncpa [#allocation3], 1
    %3075 = vsyncpa [#allocation6], 1
    %3076 = vsyncpa [#allocation9], 1
    %3077 = vsyncpa [#allocation12], 1
    %3078 = vsyncpa [#allocation15], 1
    %3079 = vsyncpa [#allocation4], 1

</llo_original>
